<compile_context>
chip_gen: v6e
topology: v6e:2x2x1
jax: 0.10.0
libtpu: 0.0.40
codegen_flags: <defaults>
</compile_context>

<pallas_src>
import math
import functools

import numpy as np
import jax
import jax.numpy as jnp
from jax.experimental import pallas as pl
from jax.experimental.pallas import tpu as pltpu


# ----------------------------------------------------------------------------
# fused sincos (shared range reduction)
# ----------------------------------------------------------------------------
_TWO_OVER_PI = float(np.float32(2.0 / np.pi))
_PIO2_HI = float(np.float32(np.pi / 2.0))
_PIO2_LO = float(np.float64(np.pi / 2.0) - np.float64(np.float32(np.pi / 2.0)))


def _sincos(f):
    """cos(f), sin(f) with ONE shared range reduction (all VPU ops).

    Valid for |f| << 2**22; Fourier-feature arguments are O(10..100) rad.
    Polynomial truncation error on [-pi/4, pi/4] is < 4e-7.
    """
    k = jnp.floor(f * _TWO_OVER_PI + 0.5)            # nearest quadrant count
    q = k.astype(jnp.int32)
    r = (f - k * _PIO2_HI) - k * _PIO2_LO             # Cody-Waite reduced arg
    r2 = r * r
    s_p = r * (1.0 + r2 * (-1.0 / 6.0 + r2 * (1.0 / 120.0
                + r2 * (-1.0 / 5040.0 + r2 * (1.0 / 362880.0)))))
    c_p = 1.0 + r2 * (-0.5 + r2 * (1.0 / 24.0
                + r2 * (-1.0 / 720.0 + r2 * (1.0 / 40320.0))))
    swap = (q & 1) != 0
    sin_b = jnp.where(swap, c_p, s_p)
    cos_b = jnp.where(swap, s_p, c_p)
    sin_f = jnp.where((q & 2) != 0, -sin_b, sin_b)
    cos_f = jnp.where(((q + 1) & 2) != 0, -cos_b, cos_b)
    return cos_f, sin_f


def _project(x_ref, wt_ref):
    # Tiny-K projection on the otherwise-idle MXU ("max, not sum": the kernel is
    # VALU/HBM-bound, so MXU utilization does not matter).  precision=HIGHEST
    # keeps the contraction ~f32-exact (multi-pass bf16 on the MXU); this is
    # required because the result feeds cos/sin of large arguments.
    return jax.lax.dot_general(
        x_ref[...], wt_ref[...], (((1,), (0,)), ((), ())),
        preferred_element_type=jnp.float32,
        precision=jax.lax.Precision.HIGHEST)


# ----------------------------------------------------------------------------
# Pallas kernels
# ----------------------------------------------------------------------------
def _fourier_kernel_fused(x_ref, wt_ref, o_ref, *, half):
    """x_ref: (Tr, in_f_p) f32; wt_ref: (in_f_p, half) f32 (2*pi pre-folded);
    o_ref: (Tr, 2*half) = [cos(f) | sin(f)].  half % 128 == 0 here, so both
    stores are lane-aligned unmasked vst."""
    cos_f, sin_f = _sincos(_project(x_ref, wt_ref))
    o_ref[:, :half] = cos_f.astype(o_ref.dtype)
    o_ref[:, half:] = sin_f.astype(o_ref.dtype)


def _fourier_kernel_split(x_ref, wt_ref, cos_ref, sin_ref):
    """Unaligned-half variant: two separate lane-dense outputs."""
    cos_f, sin_f = _sincos(_project(x_ref, wt_ref))
    cos_ref[...] = cos_f.astype(cos_ref.dtype)
    sin_ref[...] = sin_f.astype(sin_ref.dtype)


def _round_up(x, m):
    return ((x + m - 1) // m) * m


# ----------------------------------------------------------------------------
# wrapper
# ----------------------------------------------------------------------------
def fourier_features(x, weight, *, row_tile=1024, out_dtype=None):
    """JAX/Pallas equivalent of FourierFeatures.forward.

    x:      (..., in_features)            (cast to f32 internally)
    weight: (out_features // 2, in_features)
    out_dtype: optional output dtype (e.g. jnp.bfloat16 to halve writeback).
    returns (..., out_features)
    """
    half, in_f = weight.shape
    assert x.shape[-1] == in_f
    out_f = 2 * half
    out_dtype = jnp.dtype(out_dtype) if out_dtype is not None else jnp.dtype(x.dtype)

    lead = x.shape[:-1]
    rows = 1
    for s in lead:
        rows *= int(s)

    x2 = x.reshape(rows, in_f).astype(jnp.float32)
    # Fold the 2*pi scale into the tiny weight once, outside the kernel.
    wt = jnp.transpose(weight).astype(jnp.float32) * (2.0 * math.pi)

    # Pad the tiny contraction dim to a sublane multiple for a clean MXU tile.
    in_f_p = max(8, _round_up(in_f, 8))
    if in_f_p != in_f:
        x2 = jnp.pad(x2, ((0, 0), (0, in_f_p - in_f)))
        wt = jnp.pad(wt, ((0, in_f_p - in_f), (0, 0)))

    # --- row-tile selection ---------------------------------------------------
    out_bytes = out_dtype.itemsize
    # double-buffered input + output per grid step:
    bytes_per_row = 2 * (4 * in_f_p + out_bytes * out_f)
    vmem_budget = 12 << 20          # stays under the smallest scoped-VMEM default (v5e: 16 MiB)
    max_rows = max(8, (vmem_budget // bytes_per_row) // 8 * 8)
    row_tile = min(int(row_tile), max_rows)
    if rows < 2 * row_tile:
        # Small-rows fast path (don't pad a batch-sized input to a full tile)
        # while still producing >= 2 grid steps when possible, so both v7x
        # TensorCores get a share of the "parallel" row axis.
        row_tile = max(8, _round_up(pl.cdiv(rows, 2), 8)) if rows > 8 else 8

    n_tiles = pl.cdiv(rows, row_tile)
    rows_p = n_tiles * row_tile
    if rows_p != rows:
        x2 = jnp.pad(x2, ((0, rows_p - rows), (0, 0)))   # zero rows -> cos=1/sin=0, sliced off

    cost = pl.CostEstimate(
        flops=2 * rows_p * in_f_p * half + 40 * rows_p * half,   # matmul + sincos polys (VPU)
        transcendentals=0,                                       # no EUP sin/cos on TPU
        bytes_accessed=4 * rows_p * in_f_p + 4 * in_f_p * half + out_bytes * rows_p * out_f,
    )

    x_spec = pl.BlockSpec((row_tile, in_f_p), lambda i: (i, 0))
    w_spec = pl.BlockSpec((in_f_p, half), lambda i: (0, 0))       # grid-invariant, tiny
    params = pltpu.CompilerParams(dimension_semantics=("parallel",))

    if half % 128 == 0:
        out = pl.pallas_call(
            functools.partial(_fourier_kernel_fused, half=half),
            out_shape=jax.ShapeDtypeStruct((rows_p, out_f), out_dtype),
            grid=(n_tiles,),
            in_specs=[x_spec, w_spec],
            out_specs=pl.BlockSpec((row_tile, out_f), lambda i: (i, 0)),
            compiler_params=params,
            cost_estimate=cost,
        )(x2, wt)
    else:
        # Unaligned half: keep each half lane-dense on its own output instead of
        # a masked mid-vreg store at column `half`; join outside the kernel.
        cos_p, sin_p = pl.pallas_call(
            _fourier_kernel_split,
            out_shape=(jax.ShapeDtypeStruct((rows_p, half), out_dtype),
                       jax.ShapeDtypeStruct((rows_p, half), out_dtype)),
            grid=(n_tiles,),
            in_specs=[x_spec, w_spec],
            out_specs=(pl.BlockSpec((row_tile, half), lambda i: (i, 0)),
                       pl.BlockSpec((row_tile, half), lambda i: (i, 0))),
            compiler_params=params,
            cost_estimate=cost,
        )(x2, wt)
        out = jnp.concatenate([cos_p, sin_p], axis=-1)

    if rows_p != rows:
        out = out[:rows]
    return out.reshape(*lead, out_f)


# ----------------------------------------------------------------------------
# pure-JAX reference (mirrors the PyTorch forward literally)
# ----------------------------------------------------------------------------
def ref_fourier_features(x, weight):
    f = 2.0 * math.pi * jnp.matmul(x, weight.T)
    return jnp.concatenate([jnp.cos(f), jnp.sin(f)], axis=-1)


# ----------------------------------------------------------------------------
if __name__ == "__main__":
    # Positional-feature-like case: batch 2, 200 tokens, in_features=8,
    # out_features=256 (each cos/sin half is a lane-dense 128 columns).
    B, N = 2, 200
    in_features, out_features = 8, 256
    std = 1.0

    key = jax.random.PRNGKey(0)
    k_x, k_w, k_t = jax.random.split(key, 3)
    x = jax.random.normal(k_x, (B, N, in_features), jnp.float32)
    weight = jax.random.normal(k_w, (out_features // 2, in_features), jnp.float32) * std

    out = jax.jit(fourier_features)(x, weight)
    out = jax.block_until_ready(out)

    with jax.default_matmul_precision("highest"):
        ref = ref_fourier_features(x, weight)
    ref = jax.block_until_ready(ref)

    assert out.shape == (B, N, out_features) and out.dtype == jnp.float32
    np.testing.assert_allclose(np.asarray(out), np.asarray(ref), rtol=2e-3, atol=2e-3)

    # Small-rows fast path (timestep-embedding-like: rows == batch == 4).
    t = jax.random.normal(k_t, (4, in_features), jnp.float32)
    out_t = jax.block_until_ready(jax.jit(fourier_features)(t, weight))
    with jax.default_matmul_precision("highest"):
        ref_t = jax.block_until_ready(ref_fourier_features(t, weight))
    assert out_t.shape == (4, out_features)
    np.testing.assert_allclose(np.asarray(out_t), np.asarray(ref_t), rtol=2e-3, atol=2e-3)

    print("KERNEL_OK")
</pallas_src>

<mosaic_0001>
module attributes {stable_mosaic.version = 11 : i64} {
  func.func @_fourier_kernel_fused(%arg0: i32, %arg1: memref<200x8xf32, #tpu.memory_space<vmem>>, %arg2: memref<8x128xf32, #tpu.memory_space<vmem>>, %arg3: memref<200x256xf32, #tpu.memory_space<vmem>>) attributes {dimension_semantics = [#tpu.dimension_semantics<parallel>], iteration_bounds = array<i64: 2>, scalar_prefetch = 0 : i64, scratch_operands = 0 : i64, tpu.core_type = #tpu.core_type<tc>, window_params = [{transform_indices = @transform_0, window_bounds = array<i64: 200, 8>}, {pipeline_mode = #tpu.pipeline_mode<synchronous>, transform_indices = @transform_1, window_bounds = array<i64: 8, 128>}, {transform_indices = @transform_2, window_bounds = array<i64: 200, 256>}]} {
    %c0 = arith.constant 0 : index
    %c0_0 = arith.constant 0 : index
    %0 = vector.load %arg1[%c0, %c0_0] : memref<200x8xf32, #tpu.memory_space<vmem>>, vector<200x8xf32>
    %c0_1 = arith.constant 0 : index
    %c0_2 = arith.constant 0 : index
    %1 = vector.load %arg2[%c0_1, %c0_2] : memref<8x128xf32, #tpu.memory_space<vmem>>, vector<8x128xf32>
    %cst = arith.constant dense<0.000000e+00> : vector<200x128xf32>
    %2 = tpu.matmul %0, %1, %cst {dimension_numbers = #tpu.dot_dimension_numbers<[1], [0], [0], [1], [0, 0, 1, 1], [], []>, precision = #tpu.contract_precision<fp32>} : vector<200x8xf32>, vector<8x128xf32>, vector<200x128xf32> -> vector<200x128xf32>
    %cst_3 = arith.constant 0.636619746 : f32
    %3 = vector.broadcast %cst_3 : f32 to vector<200x128xf32>
    %4 = arith.mulf %2, %3 : vector<200x128xf32>
    %cst_4 = arith.constant 5.000000e-01 : f32
    %5 = vector.broadcast %cst_4 : f32 to vector<200x128xf32>
    %6 = arith.addf %4, %5 : vector<200x128xf32>
    %7 = math.floor %6 : vector<200x128xf32>
    %8 = arith.fptosi %7 : vector<200x128xf32> to vector<200x128xi32>
    %cst_5 = arith.constant 1.57079637 : f32
    %9 = vector.broadcast %cst_5 : f32 to vector<200x128xf32>
    %10 = arith.mulf %7, %9 : vector<200x128xf32>
    %11 = arith.subf %2, %10 : vector<200x128xf32>
    %cst_6 = arith.constant -4.37113883E-8 : f32
    %12 = vector.broadcast %cst_6 : f32 to vector<200x128xf32>
    %13 = arith.mulf %7, %12 : vector<200x128xf32>
    %14 = arith.subf %11, %13 : vector<200x128xf32>
    %15 = arith.mulf %14, %14 : vector<200x128xf32>
    %cst_7 = arith.constant 2.75573188E-6 : f32
    %16 = vector.broadcast %cst_7 : f32 to vector<200x128xf32>
    %17 = arith.mulf %15, %16 : vector<200x128xf32>
    %cst_8 = arith.constant -1.98412701E-4 : f32
    %18 = vector.broadcast %cst_8 : f32 to vector<200x128xf32>
    %19 = arith.addf %18, %17 : vector<200x128xf32>
    %20 = arith.mulf %15, %19 : vector<200x128xf32>
    %cst_9 = arith.constant 0.00833333377 : f32
    %21 = vector.broadcast %cst_9 : f32 to vector<200x128xf32>
    %22 = arith.addf %21, %20 : vector<200x128xf32>
    %23 = arith.mulf %15, %22 : vector<200x128xf32>
    %cst_10 = arith.constant -0.166666672 : f32
    %24 = vector.broadcast %cst_10 : f32 to vector<200x128xf32>
    %25 = arith.addf %24, %23 : vector<200x128xf32>
    %26 = arith.mulf %15, %25 : vector<200x128xf32>
    %cst_11 = arith.constant 1.000000e+00 : f32
    %27 = vector.broadcast %cst_11 : f32 to vector<200x128xf32>
    %28 = arith.addf %27, %26 : vector<200x128xf32>
    %29 = arith.mulf %14, %28 : vector<200x128xf32>
    %cst_12 = arith.constant 2.48015876E-5 : f32
    %30 = vector.broadcast %cst_12 : f32 to vector<200x128xf32>
    %31 = arith.mulf %15, %30 : vector<200x128xf32>
    %cst_13 = arith.constant -0.00138888892 : f32
    %32 = vector.broadcast %cst_13 : f32 to vector<200x128xf32>
    %33 = arith.addf %32, %31 : vector<200x128xf32>
    %34 = arith.mulf %15, %33 : vector<200x128xf32>
    %cst_14 = arith.constant 0.0416666679 : f32
    %35 = vector.broadcast %cst_14 : f32 to vector<200x128xf32>
    %36 = arith.addf %35, %34 : vector<200x128xf32>
    %37 = arith.mulf %15, %36 : vector<200x128xf32>
    %cst_15 = arith.constant -5.000000e-01 : f32
    %38 = vector.broadcast %cst_15 : f32 to vector<200x128xf32>
    %39 = arith.addf %38, %37 : vector<200x128xf32>
    %40 = arith.mulf %15, %39 : vector<200x128xf32>
    %cst_16 = arith.constant 1.000000e+00 : f32
    %41 = vector.broadcast %cst_16 : f32 to vector<200x128xf32>
    %42 = arith.addf %41, %40 : vector<200x128xf32>
    %c1_i32 = arith.constant 1 : i32
    %43 = vector.broadcast %c1_i32 : i32 to vector<200x128xi32>
    %44 = arith.andi %8, %43 : vector<200x128xi32>
    %c0_i32 = arith.constant 0 : i32
    %45 = vector.broadcast %c0_i32 : i32 to vector<200x128xi32>
    %46 = arith.cmpi ne, %44, %45 : vector<200x128xi32>
    %47 = arith.select %46, %42, %29 : vector<200x128xi1>, vector<200x128xf32>
    %48 = arith.select %46, %29, %42 : vector<200x128xi1>, vector<200x128xf32>
    %c2_i32 = arith.constant 2 : i32
    %49 = vector.broadcast %c2_i32 : i32 to vector<200x128xi32>
    %50 = arith.andi %8, %49 : vector<200x128xi32>
    %c0_i32_17 = arith.constant 0 : i32
    %51 = vector.broadcast %c0_i32_17 : i32 to vector<200x128xi32>
    %52 = arith.cmpi ne, %50, %51 : vector<200x128xi32>
    %cst_18 = arith.constant 0.000000e+00 : f32
    %53 = vector.broadcast %cst_18 : f32 to vector<200x128xf32>
    %54 = arith.subf %53, %47 : vector<200x128xf32>
    %55 = arith.select %52, %54, %47 : vector<200x128xi1>, vector<200x128xf32>
    %c1_i32_19 = arith.constant 1 : i32
    %56 = vector.broadcast %c1_i32_19 : i32 to vector<200x128xi32>
    %57 = arith.addi %8, %56 : vector<200x128xi32>
    %c2_i32_20 = arith.constant 2 : i32
    %58 = vector.broadcast %c2_i32_20 : i32 to vector<200x128xi32>
    %59 = arith.andi %57, %58 : vector<200x128xi32>
    %c0_i32_21 = arith.constant 0 : i32
    %60 = vector.broadcast %c0_i32_21 : i32 to vector<200x128xi32>
    %61 = arith.cmpi ne, %59, %60 : vector<200x128xi32>
    %cst_22 = arith.constant 0.000000e+00 : f32
    %62 = vector.broadcast %cst_22 : f32 to vector<200x128xf32>
    %63 = arith.subf %62, %48 : vector<200x128xf32>
    %64 = arith.select %61, %63, %48 : vector<200x128xi1>, vector<200x128xf32>
    %c0_23 = arith.constant 0 : index
    %c0_24 = arith.constant 0 : index
    %65 = vector.load %arg3[%c0_23, %c0_24] : memref<200x256xf32, #tpu.memory_space<vmem>>, vector<200x128xf32>
    tpu.vector_store %arg3[%c0_23, %c0_24], %64 {strides = array<i32>} : memref<200x256xf32, #tpu.memory_space<vmem>>, vector<200x128xf32>,
    %c0_25 = arith.constant 0 : index
    %c128 = arith.constant 128 : index
    %66 = vector.load %arg3[%c0_25, %c128] : memref<200x256xf32, #tpu.memory_space<vmem>>, vector<200x128xf32>
    tpu.vector_store %arg3[%c0_25, %c128], %55 {strides = array<i32>} : memref<200x256xf32, #tpu.memory_space<vmem>>, vector<200x128xf32>,
    return
  }
  func.func @transform_0(%arg0: i32) -> (i32, i32) {
    %c0_i32 = arith.constant 0 : i32
    %c0_i32_0 = arith.constant 0 : i32
    return %arg0, %c0_i32 : i32, i32
  }
  func.func @transform_1(%arg0: i32) -> (i32, i32) {
    %c0_i32 = arith.constant 0 : i32
    %c0_i32_0 = arith.constant 0 : i32
    %c0_i32_1 = arith.constant 0 : i32
    return %c0_i32, %c0_i32_0 : i32, i32
  }
  func.func @transform_2(%arg0: i32) -> (i32, i32) {
    %c0_i32 = arith.constant 0 : i32
    %c0_i32_0 = arith.constant 0 : i32
    return %arg0, %c0_i32 : i32, i32
  }
}

</mosaic_0001>

<llo_original>
// kernel: fourier_features.1
$region0: #{fourier_features.1}
  #allocation0 [shape = 'u32[]', space=smem, size = 0x4, offset = 0x4, fixed_abs, tag = 'smem constant byte address 0x4 - core index']
  #allocation1 [shape = 'u32[144,128]{1,0:T(1,128)}', space=vmem, size = 0x12000, scoped, tag = 'internal scratch']
  %s0 = inlined_call_operand.vmem [shape: f32[400,8], index: 0, kind: input, shape index: {}]
  %s1 = inlined_call_operand.vmem [shape: f32[8,128], index: 1, kind: input, shape index: {}]
  %s2 = inlined_call_operand.hbm [shape: f32[400,256], index: 2, kind: output, shape index: {}]
  %s3 = sld [smem:[#allocation0]]
  $region41: #{fourier_features.1} parent=0
    _
  %s5 = ssub.s32 1, %s3
  %s6 = scalar_select 0, %s5, %s3
  $region1: #{fourier_features.1} parent=0
    #allocation2 [shape = 'u8[409600]{0}', space=vmem, size = 0x64000, scoped, tag = 'output window, operand 0']
    #allocation3 [shape = 's32[2]{0}', space=sflag, size = 0x8, scoped, tag = 'scoped memory for fourier_features.1']
    %7 = vsyncpa [#allocation3], 0
    %s8 = scalar_lea.sflag [#allocation3], 1
    %9 = vsyncpa %s8, 0
    loop: start=0, step=1, limit=4
    $region2: #{fourier_features.1} parent=1 // loop_pre_header
      _
    $region3: #{fourier_features.1} parent=1 // loop_header
      %s11 = sphi 0, %s15
      %p12 = scmp.ge.s32.totalorder %s11, 4
      %s21 = sphi 0, %s23
      %s24 = sphi 0, %s21
      %s25 = sphi 0, %s24
      %s41 = sphi 0, %s25
      %s45 = sphi 0, %s45
      %s47 = sphi 0, %s45
      %s48 = sphi 0, %s47
      %s62 = sphi 0, %s48
      %s68 = sphi 0, %s70
      %s71 = sphi 0, %s68
      %s72 = sphi 0, %s71
      %s88 = sphi 0, %s72
    $region4: #{fourier_features.1} parent=1 // loop_header_branch
      %14 = sbr.rel (%p12) target = $region8
    $region5: #{fourier_features.1} parent=1 // loop_body
      %s16 = ssub.s32 %s11, 1
      %s17 = ssub.s32 %s11, 2
      %s18 = sadd.s32 %s11, 1
      %s19 = ssub.s32 %s11, %s18
      %p20 = scmp.eq.s32.totalorder %s19, 0
      %s22 = sadd.s32 %s21, 1
      %s23 = scalar_select %p20, %s21, %s22
      %p26 = pneg %p20
      %p27 = scmp.eq.s32.totalorder %s11, 1
      %p28 = por %p26, %p27
      %p29 = scmp.ne.s32.totalorder %s21, %s24
      %p30 = scmp.eq.s32.totalorder %s11, 0
      %p31 = por %p29, %p30
      %p32 = scmp.ne.s32.totalorder %s21, %s24
      %p33 = scmp.eq.s32.totalorder %s16, 1
      %p34 = por %p32, %p33
      %p35 = scmp.ne.s32.totalorder %s24, %s25
      %p36 = scmp.eq.s32.totalorder %s16, 0
      %p37 = por %p35, %p36
      %p38 = scmp.ne.s32.totalorder %s24, %s25
      %p39 = scmp.eq.s32.totalorder %s17, 1
      %p40 = por %p38, %p39
      %p42 = scmp.ne.s32.totalorder %s25, %s41
      %p43 = scmp.eq.s32.totalorder %s17, 0
      %p44 = por %p42, %p43
      %s46 = sadd.s32 %s45, 1
      %p49 = scmp.eq.s32.totalorder %s11, 1
      %p50 = scmp.ne.s32.totalorder %s45, %s47
      %p51 = scmp.eq.s32.totalorder %s11, 0
      %p52 = por %p50, %p51
      %p53 = scmp.ne.s32.totalorder %s45, %s47
      %p54 = scmp.eq.s32.totalorder %s16, 1
      %p55 = por %p53, %p54
      %p56 = scmp.ne.s32.totalorder %s47, %s48
      %p57 = scmp.eq.s32.totalorder %s16, 0
      %p58 = por %p56, %p57
      %p59 = scmp.ne.s32.totalorder %s47, %s48
      %p60 = scmp.eq.s32.totalorder %s17, 1
      %p61 = por %p59, %p60
      %p63 = scmp.ne.s32.totalorder %s48, %s62
      %p64 = scmp.eq.s32.totalorder %s17, 0
      %p65 = por %p63, %p64
      %s66 = ssub.s32 %s11, %s18
      %p67 = scmp.eq.s32.totalorder %s66, 0
      %s69 = sadd.s32 %s68, 1
      %s70 = scalar_select %p67, %s68, %s69
      %p73 = pneg %p67
      %p74 = scmp.eq.s32.totalorder %s11, 1
      %p75 = por %p73, %p74
      %p76 = scmp.ne.s32.totalorder %s68, %s71
      %p77 = scmp.eq.s32.totalorder %s11, 0
      %p78 = por %p76, %p77
      %p79 = scmp.ne.s32.totalorder %s68, %s71
      %p80 = scmp.eq.s32.totalorder %s16, 1
      %p81 = por %p79, %p80
      %p82 = scmp.ne.s32.totalorder %s71, %s72
      %p83 = scmp.eq.s32.totalorder %s16, 0
      %p84 = por %p82, %p83
      %p85 = scmp.ne.s32.totalorder %s71, %s72
      %p86 = scmp.eq.s32.totalorder %s17, 1
      %p87 = por %p85, %p86
      %p89 = scmp.ne.s32.totalorder %s72, %s88
      %p90 = scmp.eq.s32.totalorder %s17, 0
      %p91 = por %p89, %p90
      %p92 = scmp.le.s32.totalorder 1, %s11
      %p93 = scmp.lt.s32.totalorder %s11, 3
      %p94 = pnand %p92, %p93
      %p95 = pneg %p94
      // Predicated region
      $region9: #{fourier_features.1} parent=5 // pred_check
        _
      $region10: #{fourier_features.1} parent=5 // pred_check_branch
        %97 = sbr.rel (%p94) target = $region12
      $region11: #{fourier_features.1} parent=5 // pred_region
        %s98 = ssub.s32 %s11, 1
        // Predicated region
        $region13: #{fourier_features.1} parent=11 // pred_check
          %p99 = pneg %p58
        $region14: #{fourier_features.1} parent=11 // pred_check_branch
          %101 = sbr.rel (%p99) target = $region16
        $region15: #{fourier_features.1} parent=11 // pred_region
          _
        $region16: #{fourier_features.1} parent=11 // pred_fallthru
          _
      $region12: #{fourier_features.1} parent=5 // pred_fallthru
        _
      %p102 = scmp.lt.s32.totalorder %s11, 2
      // Predicated region
      $region17: #{fourier_features.1} parent=5 // pred_check
        %p103 = pneg %p102
      $region18: #{fourier_features.1} parent=5 // pred_check_branch
        %105 = sbr.rel (%p103) target = $region20
      $region19: #{fourier_features.1} parent=5 // pred_region
        // Predicated region
        $region21: #{fourier_features.1} parent=19 // pred_check
          %p106 = pneg %p31
        $region22: #{fourier_features.1} parent=19 // pred_check_branch
          %108 = sbr.rel (%p106) target = $region24
        $region23: #{fourier_features.1} parent=19 // pred_region
          %s109 = smul.u32 25, %s11
          %p110 = scmp.lt.s32.totalorder %s109, 49
          %s111 = scalar_select %p110, %s109, 49
          %s112 = smul.addr %s111, 8
          %s113 = scalar_lea.vmem %s0, %s112
          %s114 = smul.u32 25, %s11
        $region24: #{fourier_features.1} parent=19 // pred_fallthru
          _
      $region20: #{fourier_features.1} parent=5 // pred_fallthru
        _
      %p115 = scmp.le.s32.totalorder 1, %s11
      %p116 = scmp.lt.s32.totalorder %s11, 3
      %p117 = pnand %p115, %p116
      %p118 = pneg %p117
      // Predicated region
      $region25: #{fourier_features.1} parent=5 // pred_check
        _
      $region26: #{fourier_features.1} parent=5 // pred_check_branch
        %120 = sbr.rel (%p117) target = $region28
      $region27: #{fourier_features.1} parent=5 // pred_region
        %s121 = ssub.s32 %s11, 1
        %s122 = smul.u32 25, %s16
        %p123 = scmp.lt.s32.totalorder %s122, 49
        %s124 = scalar_select %p123, %s122, 49
        %s125 = smul.addr %s124, 8
        %s126 = scalar_lea.vmem %s0, %s125
        %p127 = pneg %p37
        %p128 = pneg %p34
        %p129 = pneg %p58
        %p130 = pneg %p55
        %p131 = pneg %p84
        %p132 = pneg %p81
        %s133 = sand.u32 %s71, 1
        %s134 = scalar_lea.sflag [#allocation3], %s133
        %s135 = sand.u32 %s71, 1
        %s136 = smul.addr %s135, 400
        %s137 = scalar_lea.vmem [#allocation2], %s136
        %s138 = smul.u32 25, %s16
        %p139 = scmp.lt.s32.totalorder %s138, 49
        %s140 = scalar_select %p139, %s138, 49
        %s141 = smul.addr %s140, 8
        %s142 = scalar_lea.vmem %s0, %s141
        %s143 = smul.u32 25, %s16
        %s144 = smul.u32 25, %s16
        %v145 = vld [vmem:[%s142] sm:$0xff]
        %v146 = vld [vmem:[%s142 + $0x8] sm:$0xff]
        %v147 = vld [vmem:[%s142 + $0x10] sm:$0xff]
        %v148 = vld [vmem:[%s142 + $0x18] sm:$0xff]
        %v149 = vld [vmem:[%s142 + $0x20] sm:$0xff]
        %v150 = vld [vmem:[%s142 + $0x28] sm:$0xff]
        %v151 = vld [vmem:[%s142 + $0x30] sm:$0xff]
        %v152 = vld [vmem:[%s142 + $0x38] sm:$0xff]
        %v153 = vld [vmem:[%s142 + $0x40] sm:$0xff]
        %v154 = vld [vmem:[%s142 + $0x48] sm:$0xff]
        %v155 = vld [vmem:[%s142 + $0x50] sm:$0xff]
        %v156 = vld [vmem:[%s142 + $0x58] sm:$0xff]
        %v157 = vld [vmem:[%s142 + $0x60] sm:$0xff]
        %v158 = vld [vmem:[%s142 + $0x68] sm:$0xff]
        %v159 = vld [vmem:[%s142 + $0x70] sm:$0xff]
        %v160 = vld [vmem:[%s142 + $0x78] sm:$0xff]
        %v161 = vld [vmem:[%s142 + $0x80] sm:$0xff]
        %v162 = vld [vmem:[%s142 + $0x88] sm:$0xff]
        %v163 = vld [vmem:[%s142 + $0x90] sm:$0xff]
        %v164 = vld [vmem:[%s142 + $0x98] sm:$0xff]
        %v165 = vld [vmem:[%s142 + $0xa0] sm:$0xff]
        %v166 = vld [vmem:[%s142 + $0xa8] sm:$0xff]
        %v167 = vld [vmem:[%s142 + $0xb0] sm:$0xff]
        %v168 = vld [vmem:[%s142 + $0xb8] sm:$0xff]
        %v169 = vld [vmem:[%s142 + $0xc0] sm:$0xff]
        %v170 = vld [vmem:[%s1] sm:$0xff]
        %vm171 = vcmask 64512
        %v173 = vsel %vm171, %v145, 0
        %v176 = vsel %vm171, %v146, 0
        %v179 = vsel %vm171, %v147, 0
        %v182 = vsel %vm171, %v148, 0
        %v185 = vsel %vm171, %v149, 0
        %v188 = vsel %vm171, %v150, 0
        %v191 = vsel %vm171, %v151, 0
        %v194 = vsel %vm171, %v152, 0
        %v197 = vsel %vm171, %v153, 0
        %v200 = vsel %vm171, %v154, 0
        %v203 = vsel %vm171, %v155, 0
        %v206 = vsel %vm171, %v156, 0
        %v209 = vsel %vm171, %v157, 0
        %v212 = vsel %vm171, %v158, 0
        %v215 = vsel %vm171, %v159, 0
        %v218 = vsel %vm171, %v160, 0
        %v221 = vsel %vm171, %v161, 0
        %v224 = vsel %vm171, %v162, 0
        %v227 = vsel %vm171, %v163, 0
        %v230 = vsel %vm171, %v164, 0
        %v233 = vsel %vm171, %v165, 0
        %v236 = vsel %vm171, %v166, 0
        %v239 = vsel %vm171, %v167, 0
        %v242 = vsel %vm171, %v168, 0
        %v245 = vsel %vm171, %v169, 0
        %247 = vmatprep.subr.mxu0 0.0
        %248 = vmatpush1.msra.mxu0 0.0
        %249 = vmatprep.subr.mxu0 0.0
        %250 = vmatpush1.msra.mxu0 0.0
        %251 = vmatprep.subr.mxu0 0.0
        %252 = vmatpush1.msra.mxu0 0.0
        %253 = vmatprep.subr.mxu0 0.0
        %254 = vmatpush1.msra.mxu0 0.0
        %255 = vmatprep.subr.mxu0 0.0
        %256 = vmatpush1.msra.mxu0 0.0
        %257 = vmatprep.subr.mxu0 0.0
        %258 = vmatpush1.msra.mxu0 0.0
        %259 = vmatprep.subr.mxu0 0.0
        %260 = vmatpush1.msra.mxu0 0.0
        %261 = vmatprep.subr.mxu0 0.0
        %262 = vmatpush1.msra.mxu0 0.0
        %263 = vmatprep.subr.mxu0 0.0
        %264 = vmatpush1.msra.mxu0 0.0
        %265 = vmatprep.subr.mxu0 0.0
        %266 = vmatpush1.msra.mxu0 0.0
        %267 = vmatprep.subr.mxu0 0.0
        %268 = vmatpush1.msra.mxu0 0.0
        %269 = vmatprep.subr.mxu0 0.0
        %270 = vmatpush1.msra.mxu0 0.0
        %271 = vmatprep.subr.mxu0 0.0
        %272 = vmatpush1.msra.mxu0 0.0
        %273 = vmatprep.subr.mxu0 0.0
        %274 = vmatpush1.msra.mxu0 0.0
        %275 = vmatprep.subr.mxu0 0.0
        %276 = vmatpush1.msra.mxu0 0.0
        %277 = vmatprep.subr.mxu0 0.0
        %v278 = vand.u32 %v170, 4294901760
        %279 = vmatpush1.msra.mxu0 %v278
        %280 = vmatprep.subr.mxu0 0.0
        %281 = vmatpush2.msra.mxu0 0.0
        %282 = vmatprep.subr.mxu0 0.0
        %283 = vmatpush2.msra.mxu0 0.0
        %284 = vmatprep.subr.mxu0 0.0
        %285 = vmatpush2.msra.mxu0 0.0
        %286 = vmatprep.subr.mxu0 0.0
        %287 = vmatpush2.msra.mxu0 0.0
        %288 = vmatprep.subr.mxu0 0.0
        %289 = vmatpush2.msra.mxu0 0.0
        %290 = vmatprep.subr.mxu0 0.0
        %291 = vmatpush2.msra.mxu0 0.0
        %292 = vmatprep.subr.mxu0 0.0
        %293 = vmatpush2.msra.mxu0 0.0
        %294 = vmatprep.subr.mxu0 0.0
        %295 = vmatpush2.msra.mxu0 0.0
        %296 = vmatprep.subr.mxu0 0.0
        %297 = vmatpush2.msra.mxu0 0.0
        %298 = vmatprep.subr.mxu0 0.0
        %299 = vmatpush2.msra.mxu0 0.0
        %300 = vmatprep.subr.mxu0 0.0
        %301 = vmatpush2.msra.mxu0 0.0
        %302 = vmatprep.subr.mxu0 0.0
        %303 = vmatpush2.msra.mxu0 0.0
        %304 = vmatprep.subr.mxu0 0.0
        %305 = vmatpush2.msra.mxu0 0.0
        %306 = vmatprep.subr.mxu0 0.0
        %307 = vmatpush2.msra.mxu0 0.0
        %308 = vmatprep.subr.mxu0 0.0
        %309 = vmatpush2.msra.mxu0 0.0
        %310 = vmatprep.subr.mxu0 0.0
        %311 = vmatpush2.msra.mxu0 0.0
        %312 = vmatprep.mubr.f32.mxu0 0.0
        %v313 = vand.u32 %v173, 4294901760
        %v314 = vsub.f32 %v173, %v313
        %v315 = vand.u32 %v314, 4294901760
        %v316 = vsub.f32 %v314, %v315
        %v317 = vand.u32 %v316, 4294901760
        %318 = vmatmul.mubr.f32.gmra.mxu0 %v317
        %v319 = vpop.f32.mrf.mxu0
        %v320 = vadd.f32 0.0, %v319
        %v321 = vpop.f32.mrf.mxu0
        %322 = vmatprep.mubr.f32.mxu0 0.0
        %v323 = vand.u32 %v176, 4294901760
        %v324 = vsub.f32 %v176, %v323
        %v325 = vand.u32 %v324, 4294901760
        %v326 = vsub.f32 %v324, %v325
        %v327 = vand.u32 %v326, 4294901760
        %328 = vmatmul.mubr.f32.gmra.mxu0 %v327
        %v329 = vpop.f32.mrf.mxu0
        %v330 = vadd.f32 0.0, %v329
        %v331 = vpop.f32.mrf.mxu0
        %332 = vmatprep.mubr.f32.mxu0 0.0
        %v333 = vand.u32 %v179, 4294901760
        %v334 = vsub.f32 %v179, %v333
        %v335 = vand.u32 %v334, 4294901760
        %v336 = vsub.f32 %v334, %v335
        %v337 = vand.u32 %v336, 4294901760
        %338 = vmatmul.mubr.f32.gmra.mxu0 %v337
        %v339 = vpop.f32.mrf.mxu0
        %v340 = vadd.f32 0.0, %v339
        %v341 = vpop.f32.mrf.mxu0
        %342 = vmatprep.mubr.f32.mxu0 0.0
        %v343 = vand.u32 %v182, 4294901760
        %v344 = vsub.f32 %v182, %v343
        %v345 = vand.u32 %v344, 4294901760
        %v346 = vsub.f32 %v344, %v345
        %v347 = vand.u32 %v346, 4294901760
        %348 = vmatmul.mubr.f32.gmra.mxu0 %v347
        %v349 = vpop.f32.mrf.mxu0
        %v350 = vadd.f32 0.0, %v349
        %v351 = vpop.f32.mrf.mxu0
        %352 = vmatprep.mubr.f32.mxu0 0.0
        %v353 = vand.u32 %v185, 4294901760
        %v354 = vsub.f32 %v185, %v353
        %v355 = vand.u32 %v354, 4294901760
        %v356 = vsub.f32 %v354, %v355
        %v357 = vand.u32 %v356, 4294901760
        %358 = vmatmul.mubr.f32.gmra.mxu0 %v357
        %v359 = vpop.f32.mrf.mxu0
        %v360 = vadd.f32 0.0, %v359
        %v361 = vpop.f32.mrf.mxu0
        %362 = vmatprep.mubr.f32.mxu0 0.0
        %v363 = vand.u32 %v188, 4294901760
        %v364 = vsub.f32 %v188, %v363
        %v365 = vand.u32 %v364, 4294901760
        %v366 = vsub.f32 %v364, %v365
        %v367 = vand.u32 %v366, 4294901760
        %368 = vmatmul.mubr.f32.gmra.mxu0 %v367
        %v369 = vpop.f32.mrf.mxu0
        %v370 = vadd.f32 0.0, %v369
        %v371 = vpop.f32.mrf.mxu0
        %372 = vmatprep.mubr.f32.mxu0 0.0
        %v373 = vand.u32 %v191, 4294901760
        %v374 = vsub.f32 %v191, %v373
        %v375 = vand.u32 %v374, 4294901760
        %v376 = vsub.f32 %v374, %v375
        %v377 = vand.u32 %v376, 4294901760
        %378 = vmatmul.mubr.f32.gmra.mxu0 %v377
        %v379 = vpop.f32.mrf.mxu0
        %v380 = vadd.f32 0.0, %v379
        %v381 = vpop.f32.mrf.mxu0
        %382 = vmatprep.mubr.f32.mxu0 0.0
        %v383 = vand.u32 %v194, 4294901760
        %v384 = vsub.f32 %v194, %v383
        %v385 = vand.u32 %v384, 4294901760
        %v386 = vsub.f32 %v384, %v385
        %v387 = vand.u32 %v386, 4294901760
        %388 = vmatmul.mubr.f32.gmra.mxu0 %v387
        %v389 = vpop.f32.mrf.mxu0
        %v390 = vadd.f32 0.0, %v389
        %v391 = vpop.f32.mrf.mxu0
        %392 = vmatprep.mubr.f32.mxu0 0.0
        %v393 = vand.u32 %v197, 4294901760
        %v394 = vsub.f32 %v197, %v393
        %v395 = vand.u32 %v394, 4294901760
        %v396 = vsub.f32 %v394, %v395
        %v397 = vand.u32 %v396, 4294901760
        %398 = vmatmul.mubr.f32.gmra.mxu0 %v397
        %v399 = vpop.f32.mrf.mxu0
        %v400 = vadd.f32 0.0, %v399
        %v401 = vpop.f32.mrf.mxu0
        %402 = vmatprep.mubr.f32.mxu0 0.0
        %v403 = vand.u32 %v200, 4294901760
        %v404 = vsub.f32 %v200, %v403
        %v405 = vand.u32 %v404, 4294901760
        %v406 = vsub.f32 %v404, %v405
        %v407 = vand.u32 %v406, 4294901760
        %408 = vmatmul.mubr.f32.gmra.mxu0 %v407
        %v409 = vpop.f32.mrf.mxu0
        %v410 = vadd.f32 0.0, %v409
        %v411 = vpop.f32.mrf.mxu0
        %412 = vmatprep.mubr.f32.mxu0 0.0
        %v413 = vand.u32 %v203, 4294901760
        %v414 = vsub.f32 %v203, %v413
        %v415 = vand.u32 %v414, 4294901760
        %v416 = vsub.f32 %v414, %v415
        %v417 = vand.u32 %v416, 4294901760
        %418 = vmatmul.mubr.f32.gmra.mxu0 %v417
        %v419 = vpop.f32.mrf.mxu0
        %v420 = vadd.f32 0.0, %v419
        %v421 = vpop.f32.mrf.mxu0
        %422 = vmatprep.mubr.f32.mxu0 0.0
        %v423 = vand.u32 %v206, 4294901760
        %v424 = vsub.f32 %v206, %v423
        %v425 = vand.u32 %v424, 4294901760
        %v426 = vsub.f32 %v424, %v425
        %v427 = vand.u32 %v426, 4294901760
        %428 = vmatmul.mubr.f32.gmra.mxu0 %v427
        %v429 = vpop.f32.mrf.mxu0
        %v430 = vadd.f32 0.0, %v429
        %v431 = vpop.f32.mrf.mxu0
        %432 = vmatprep.mubr.f32.mxu0 0.0
        %v433 = vand.u32 %v209, 4294901760
        %v434 = vsub.f32 %v209, %v433
        %v435 = vand.u32 %v434, 4294901760
        %v436 = vsub.f32 %v434, %v435
        %v437 = vand.u32 %v436, 4294901760
        %438 = vmatmul.mubr.f32.gmra.mxu0 %v437
        %v439 = vpop.f32.mrf.mxu0
        %v440 = vadd.f32 0.0, %v439
        %v441 = vpop.f32.mrf.mxu0
        %442 = vmatprep.mubr.f32.mxu0 0.0
        %v443 = vand.u32 %v212, 4294901760
        %v444 = vsub.f32 %v212, %v443
        %v445 = vand.u32 %v444, 4294901760
        %v446 = vsub.f32 %v444, %v445
        %v447 = vand.u32 %v446, 4294901760
        %448 = vmatmul.mubr.f32.gmra.mxu0 %v447
        %v449 = vpop.f32.mrf.mxu0
        %v450 = vadd.f32 0.0, %v449
        %v451 = vpop.f32.mrf.mxu0
        %452 = vmatprep.mubr.f32.mxu0 0.0
        %v453 = vand.u32 %v215, 4294901760
        %v454 = vsub.f32 %v215, %v453
        %v455 = vand.u32 %v454, 4294901760
        %v456 = vsub.f32 %v454, %v455
        %v457 = vand.u32 %v456, 4294901760
        %458 = vmatmul.mubr.f32.gmra.mxu0 %v457
        %v459 = vpop.f32.mrf.mxu0
        %v460 = vadd.f32 0.0, %v459
        %v461 = vpop.f32.mrf.mxu0
        %462 = vmatprep.mubr.f32.mxu0 0.0
        %v463 = vand.u32 %v218, 4294901760
        %v464 = vsub.f32 %v218, %v463
        %v465 = vand.u32 %v464, 4294901760
        %v466 = vsub.f32 %v464, %v465
        %v467 = vand.u32 %v466, 4294901760
        %468 = vmatmul.mubr.f32.gmra.mxu0 %v467
        %v469 = vpop.f32.mrf.mxu0
        %v470 = vadd.f32 0.0, %v469
        %v471 = vpop.f32.mrf.mxu0
        %472 = vmatprep.mubr.f32.mxu0 0.0
        %v473 = vand.u32 %v221, 4294901760
        %v474 = vsub.f32 %v221, %v473
        %v475 = vand.u32 %v474, 4294901760
        %v476 = vsub.f32 %v474, %v475
        %v477 = vand.u32 %v476, 4294901760
        %478 = vmatmul.mubr.f32.gmra.mxu0 %v477
        %v479 = vpop.f32.mrf.mxu0
        %v480 = vadd.f32 0.0, %v479
        %v481 = vpop.f32.mrf.mxu0
        %482 = vmatprep.mubr.f32.mxu0 0.0
        %v483 = vand.u32 %v224, 4294901760
        %v484 = vsub.f32 %v224, %v483
        %v485 = vand.u32 %v484, 4294901760
        %v486 = vsub.f32 %v484, %v485
        %v487 = vand.u32 %v486, 4294901760
        %488 = vmatmul.mubr.f32.gmra.mxu0 %v487
        %v489 = vpop.f32.mrf.mxu0
        %v490 = vadd.f32 0.0, %v489
        %v491 = vpop.f32.mrf.mxu0
        %492 = vmatprep.mubr.f32.mxu0 0.0
        %v493 = vand.u32 %v227, 4294901760
        %v494 = vsub.f32 %v227, %v493
        %v495 = vand.u32 %v494, 4294901760
        %v496 = vsub.f32 %v494, %v495
        %v497 = vand.u32 %v496, 4294901760
        %498 = vmatmul.mubr.f32.gmra.mxu0 %v497
        %v499 = vpop.f32.mrf.mxu0
        %v500 = vadd.f32 0.0, %v499
        %v501 = vpop.f32.mrf.mxu0
        %502 = vmatprep.mubr.f32.mxu0 0.0
        %v503 = vand.u32 %v230, 4294901760
        %v504 = vsub.f32 %v230, %v503
        %v505 = vand.u32 %v504, 4294901760
        %v506 = vsub.f32 %v504, %v505
        %v507 = vand.u32 %v506, 4294901760
        %508 = vmatmul.mubr.f32.gmra.mxu0 %v507
        %v509 = vpop.f32.mrf.mxu0
        %v510 = vadd.f32 0.0, %v509
        %v511 = vpop.f32.mrf.mxu0
        %512 = vmatprep.mubr.f32.mxu0 0.0
        %v513 = vand.u32 %v233, 4294901760
        %v514 = vsub.f32 %v233, %v513
        %v515 = vand.u32 %v514, 4294901760
        %v516 = vsub.f32 %v514, %v515
        %v517 = vand.u32 %v516, 4294901760
        %518 = vmatmul.mubr.f32.gmra.mxu0 %v517
        %v519 = vpop.f32.mrf.mxu0
        %v520 = vadd.f32 0.0, %v519
        %v521 = vpop.f32.mrf.mxu0
        %522 = vmatprep.mubr.f32.mxu0 0.0
        %v523 = vand.u32 %v236, 4294901760
        %v524 = vsub.f32 %v236, %v523
        %v525 = vand.u32 %v524, 4294901760
        %v526 = vsub.f32 %v524, %v525
        %v527 = vand.u32 %v526, 4294901760
        %528 = vmatmul.mubr.f32.gmra.mxu0 %v527
        %v529 = vpop.f32.mrf.mxu0
        %v530 = vadd.f32 0.0, %v529
        %v531 = vpop.f32.mrf.mxu0
        %532 = vmatprep.mubr.f32.mxu0 0.0
        %v533 = vand.u32 %v239, 4294901760
        %v534 = vsub.f32 %v239, %v533
        %v535 = vand.u32 %v534, 4294901760
        %v536 = vsub.f32 %v534, %v535
        %v537 = vand.u32 %v536, 4294901760
        %538 = vmatmul.mubr.f32.gmra.mxu0 %v537
        %v539 = vpop.f32.mrf.mxu0
        %v540 = vadd.f32 0.0, %v539
        %v541 = vpop.f32.mrf.mxu0
        %542 = vmatprep.mubr.f32.mxu0 0.0
        %v543 = vand.u32 %v242, 4294901760
        %v544 = vsub.f32 %v242, %v543
        %v545 = vand.u32 %v544, 4294901760
        %v546 = vsub.f32 %v544, %v545
        %v547 = vand.u32 %v546, 4294901760
        %548 = vmatmul.mubr.f32.gmra.mxu0 %v547
        %v549 = vpop.f32.mrf.mxu0
        %v550 = vadd.f32 0.0, %v549
        %v551 = vpop.f32.mrf.mxu0
        %552 = vmatprep.mubr.f32.mxu0 0.0
        %v553 = vand.u32 %v245, 4294901760
        %v554 = vsub.f32 %v245, %v553
        %v555 = vand.u32 %v554, 4294901760
        %v556 = vsub.f32 %v554, %v555
        %v557 = vand.u32 %v556, 4294901760
        %558 = vmatmul.mubr.f32.gmra.mxu0 %v557
        %v559 = vpop.f32.mrf.mxu0
        %v560 = vadd.f32 0.0, %v559
        %v561 = vpop.f32.mrf.mxu0
        %562 = vdwg.mxu0
        %563 = vmatprep.subr.mxu0 0.0
        %564 = vmatpush1.msra.mxu0 0.0
        %565 = vmatprep.subr.mxu0 0.0
        %566 = vmatpush1.msra.mxu0 0.0
        %567 = vmatprep.subr.mxu0 0.0
        %568 = vmatpush1.msra.mxu0 0.0
        %569 = vmatprep.subr.mxu0 0.0
        %570 = vmatpush1.msra.mxu0 0.0
        %571 = vmatprep.subr.mxu0 0.0
        %572 = vmatpush1.msra.mxu0 0.0
        %573 = vmatprep.subr.mxu0 0.0
        %574 = vmatpush1.msra.mxu0 0.0
        %575 = vmatprep.subr.mxu0 0.0
        %576 = vmatpush1.msra.mxu0 0.0
        %577 = vmatprep.subr.mxu0 0.0
        %578 = vmatpush1.msra.mxu0 0.0
        %579 = vmatprep.subr.mxu0 0.0
        %580 = vmatpush1.msra.mxu0 0.0
        %581 = vmatprep.subr.mxu0 0.0
        %582 = vmatpush1.msra.mxu0 0.0
        %583 = vmatprep.subr.mxu0 0.0
        %584 = vmatpush1.msra.mxu0 0.0
        %585 = vmatprep.subr.mxu0 0.0
        %586 = vmatpush1.msra.mxu0 0.0
        %587 = vmatprep.subr.mxu0 0.0
        %588 = vmatpush1.msra.mxu0 0.0
        %589 = vmatprep.subr.mxu0 0.0
        %590 = vmatpush1.msra.mxu0 0.0
        %591 = vmatprep.subr.mxu0 0.0
        %592 = vmatpush1.msra.mxu0 0.0
        %593 = vmatprep.subr.mxu0 0.0
        %v594 = vand.u32 %v170, 4294901760
        %v595 = vsub.f32 %v170, %v594
        %v596 = vand.u32 %v595, 4294901760
        %v597 = vsub.f32 %v595, %v596
        %v598 = vand.u32 %v597, 4294901760
        %599 = vmatpush1.msra.mxu0 %v598
        %600 = vmatprep.subr.mxu0 0.0
        %601 = vmatpush2.msra.mxu0 0.0
        %602 = vmatprep.subr.mxu0 0.0
        %603 = vmatpush2.msra.mxu0 0.0
        %604 = vmatprep.subr.mxu0 0.0
        %605 = vmatpush2.msra.mxu0 0.0
        %606 = vmatprep.subr.mxu0 0.0
        %607 = vmatpush2.msra.mxu0 0.0
        %608 = vmatprep.subr.mxu0 0.0
        %609 = vmatpush2.msra.mxu0 0.0
        %610 = vmatprep.subr.mxu0 0.0
        %611 = vmatpush2.msra.mxu0 0.0
        %612 = vmatprep.subr.mxu0 0.0
        %613 = vmatpush2.msra.mxu0 0.0
        %614 = vmatprep.subr.mxu0 0.0
        %615 = vmatpush2.msra.mxu0 0.0
        %616 = vmatprep.subr.mxu0 0.0
        %617 = vmatpush2.msra.mxu0 0.0
        %618 = vmatprep.subr.mxu0 0.0
        %619 = vmatpush2.msra.mxu0 0.0
        %620 = vmatprep.subr.mxu0 0.0
        %621 = vmatpush2.msra.mxu0 0.0
        %622 = vmatprep.subr.mxu0 0.0
        %623 = vmatpush2.msra.mxu0 0.0
        %624 = vmatprep.subr.mxu0 0.0
        %625 = vmatpush2.msra.mxu0 0.0
        %626 = vmatprep.subr.mxu0 0.0
        %627 = vmatpush2.msra.mxu0 0.0
        %628 = vmatprep.subr.mxu0 0.0
        %629 = vmatpush2.msra.mxu0 0.0
        %630 = vmatprep.subr.mxu0 0.0
        %631 = vmatpush2.msra.mxu0 0.0
        %632 = vmatprep.mubr.f32.mxu0 0.0
        %v633 = vand.u32 %v173, 4294901760
        %634 = vmatmul.mubr.f32.gmra.mxu0 %v633
        %v635 = vpop.f32.mrf.mxu0
        %v636 = vadd.f32 %v320, %v635
        %v637 = vpop.f32.mrf.mxu0
        %638 = vmatprep.mubr.f32.mxu0 0.0
        %v639 = vand.u32 %v176, 4294901760
        %640 = vmatmul.mubr.f32.gmra.mxu0 %v639
        %v641 = vpop.f32.mrf.mxu0
        %v642 = vadd.f32 %v330, %v641
        %v643 = vpop.f32.mrf.mxu0
        %644 = vmatprep.mubr.f32.mxu0 0.0
        %v645 = vand.u32 %v179, 4294901760
        %646 = vmatmul.mubr.f32.gmra.mxu0 %v645
        %v647 = vpop.f32.mrf.mxu0
        %v648 = vadd.f32 %v340, %v647
        %v649 = vpop.f32.mrf.mxu0
        %650 = vmatprep.mubr.f32.mxu0 0.0
        %v651 = vand.u32 %v182, 4294901760
        %652 = vmatmul.mubr.f32.gmra.mxu0 %v651
        %v653 = vpop.f32.mrf.mxu0
        %v654 = vadd.f32 %v350, %v653
        %v655 = vpop.f32.mrf.mxu0
        %656 = vmatprep.mubr.f32.mxu0 0.0
        %v657 = vand.u32 %v185, 4294901760
        %658 = vmatmul.mubr.f32.gmra.mxu0 %v657
        %v659 = vpop.f32.mrf.mxu0
        %v660 = vadd.f32 %v360, %v659
        %v661 = vpop.f32.mrf.mxu0
        %662 = vmatprep.mubr.f32.mxu0 0.0
        %v663 = vand.u32 %v188, 4294901760
        %664 = vmatmul.mubr.f32.gmra.mxu0 %v663
        %v665 = vpop.f32.mrf.mxu0
        %v666 = vadd.f32 %v370, %v665
        %v667 = vpop.f32.mrf.mxu0
        %668 = vmatprep.mubr.f32.mxu0 0.0
        %v669 = vand.u32 %v191, 4294901760
        %670 = vmatmul.mubr.f32.gmra.mxu0 %v669
        %v671 = vpop.f32.mrf.mxu0
        %v672 = vadd.f32 %v380, %v671
        %v673 = vpop.f32.mrf.mxu0
        %674 = vmatprep.mubr.f32.mxu0 0.0
        %v675 = vand.u32 %v194, 4294901760
        %676 = vmatmul.mubr.f32.gmra.mxu0 %v675
        %v677 = vpop.f32.mrf.mxu0
        %v678 = vadd.f32 %v390, %v677
        %v679 = vpop.f32.mrf.mxu0
        %680 = vmatprep.mubr.f32.mxu0 0.0
        %v681 = vand.u32 %v197, 4294901760
        %682 = vmatmul.mubr.f32.gmra.mxu0 %v681
        %v683 = vpop.f32.mrf.mxu0
        %v684 = vadd.f32 %v400, %v683
        %v685 = vpop.f32.mrf.mxu0
        %686 = vmatprep.mubr.f32.mxu0 0.0
        %v687 = vand.u32 %v200, 4294901760
        %688 = vmatmul.mubr.f32.gmra.mxu0 %v687
        %v689 = vpop.f32.mrf.mxu0
        %v690 = vadd.f32 %v410, %v689
        %v691 = vpop.f32.mrf.mxu0
        %692 = vmatprep.mubr.f32.mxu0 0.0
        %v693 = vand.u32 %v203, 4294901760
        %694 = vmatmul.mubr.f32.gmra.mxu0 %v693
        %v695 = vpop.f32.mrf.mxu0
        %v696 = vadd.f32 %v420, %v695
        %v697 = vpop.f32.mrf.mxu0
        %698 = vmatprep.mubr.f32.mxu0 0.0
        %v699 = vand.u32 %v206, 4294901760
        %700 = vmatmul.mubr.f32.gmra.mxu0 %v699
        %v701 = vpop.f32.mrf.mxu0
        %v702 = vadd.f32 %v430, %v701
        %v703 = vpop.f32.mrf.mxu0
        %704 = vmatprep.mubr.f32.mxu0 0.0
        %v705 = vand.u32 %v209, 4294901760
        %706 = vmatmul.mubr.f32.gmra.mxu0 %v705
        %v707 = vpop.f32.mrf.mxu0
        %v708 = vadd.f32 %v440, %v707
        %v709 = vpop.f32.mrf.mxu0
        %710 = vmatprep.mubr.f32.mxu0 0.0
        %v711 = vand.u32 %v212, 4294901760
        %712 = vmatmul.mubr.f32.gmra.mxu0 %v711
        %v713 = vpop.f32.mrf.mxu0
        %v714 = vadd.f32 %v450, %v713
        %v715 = vpop.f32.mrf.mxu0
        %716 = vmatprep.mubr.f32.mxu0 0.0
        %v717 = vand.u32 %v215, 4294901760
        %718 = vmatmul.mubr.f32.gmra.mxu0 %v717
        %v719 = vpop.f32.mrf.mxu0
        %v720 = vadd.f32 %v460, %v719
        %v721 = vpop.f32.mrf.mxu0
        %722 = vmatprep.mubr.f32.mxu0 0.0
        %v723 = vand.u32 %v218, 4294901760
        %724 = vmatmul.mubr.f32.gmra.mxu0 %v723
        %v725 = vpop.f32.mrf.mxu0
        %v726 = vadd.f32 %v470, %v725
        %v727 = vpop.f32.mrf.mxu0
        %728 = vmatprep.mubr.f32.mxu0 0.0
        %v729 = vand.u32 %v221, 4294901760
        %730 = vmatmul.mubr.f32.gmra.mxu0 %v729
        %v731 = vpop.f32.mrf.mxu0
        %v732 = vadd.f32 %v480, %v731
        %v733 = vpop.f32.mrf.mxu0
        %734 = vmatprep.mubr.f32.mxu0 0.0
        %v735 = vand.u32 %v224, 4294901760
        %736 = vmatmul.mubr.f32.gmra.mxu0 %v735
        %v737 = vpop.f32.mrf.mxu0
        %v738 = vadd.f32 %v490, %v737
        %v739 = vpop.f32.mrf.mxu0
        %740 = vmatprep.mubr.f32.mxu0 0.0
        %v741 = vand.u32 %v227, 4294901760
        %742 = vmatmul.mubr.f32.gmra.mxu0 %v741
        %v743 = vpop.f32.mrf.mxu0
        %v744 = vadd.f32 %v500, %v743
        %v745 = vpop.f32.mrf.mxu0
        %746 = vmatprep.mubr.f32.mxu0 0.0
        %v747 = vand.u32 %v230, 4294901760
        %748 = vmatmul.mubr.f32.gmra.mxu0 %v747
        %v749 = vpop.f32.mrf.mxu0
        %v750 = vadd.f32 %v510, %v749
        %v751 = vpop.f32.mrf.mxu0
        %752 = vmatprep.mubr.f32.mxu0 0.0
        %v753 = vand.u32 %v233, 4294901760
        %754 = vmatmul.mubr.f32.gmra.mxu0 %v753
        %v755 = vpop.f32.mrf.mxu0
        %v756 = vadd.f32 %v520, %v755
        %v757 = vpop.f32.mrf.mxu0
        %758 = vmatprep.mubr.f32.mxu0 0.0
        %v759 = vand.u32 %v236, 4294901760
        %760 = vmatmul.mubr.f32.gmra.mxu0 %v759
        %v761 = vpop.f32.mrf.mxu0
        %v762 = vadd.f32 %v530, %v761
        %v763 = vpop.f32.mrf.mxu0
        %764 = vmatprep.mubr.f32.mxu0 0.0
        %v765 = vand.u32 %v239, 4294901760
        %766 = vmatmul.mubr.f32.gmra.mxu0 %v765
        %v767 = vpop.f32.mrf.mxu0
        %v768 = vadd.f32 %v540, %v767
        %v769 = vpop.f32.mrf.mxu0
        %770 = vmatprep.mubr.f32.mxu0 0.0
        %v771 = vand.u32 %v242, 4294901760
        %772 = vmatmul.mubr.f32.gmra.mxu0 %v771
        %v773 = vpop.f32.mrf.mxu0
        %v774 = vadd.f32 %v550, %v773
        %v775 = vpop.f32.mrf.mxu0
        %776 = vmatprep.mubr.f32.mxu0 0.0
        %v777 = vand.u32 %v245, 4294901760
        %778 = vmatmul.mubr.f32.gmra.mxu0 %v777
        %v779 = vpop.f32.mrf.mxu0
        %v780 = vadd.f32 %v560, %v779
        %v781 = vpop.f32.mrf.mxu0
        %782 = vdwg.mxu0
        %783 = vmatprep.subr.mxu0 0.0
        %784 = vmatpush1.msra.mxu0 0.0
        %785 = vmatprep.subr.mxu0 0.0
        %786 = vmatpush1.msra.mxu0 0.0
        %787 = vmatprep.subr.mxu0 0.0
        %788 = vmatpush1.msra.mxu0 0.0
        %789 = vmatprep.subr.mxu0 0.0
        %790 = vmatpush1.msra.mxu0 0.0
        %791 = vmatprep.subr.mxu0 0.0
        %792 = vmatpush1.msra.mxu0 0.0
        %793 = vmatprep.subr.mxu0 0.0
        %794 = vmatpush1.msra.mxu0 0.0
        %795 = vmatprep.subr.mxu0 0.0
        %796 = vmatpush1.msra.mxu0 0.0
        %797 = vmatprep.subr.mxu0 0.0
        %798 = vmatpush1.msra.mxu0 0.0
        %799 = vmatprep.subr.mxu0 0.0
        %800 = vmatpush1.msra.mxu0 0.0
        %801 = vmatprep.subr.mxu0 0.0
        %802 = vmatpush1.msra.mxu0 0.0
        %803 = vmatprep.subr.mxu0 0.0
        %804 = vmatpush1.msra.mxu0 0.0
        %805 = vmatprep.subr.mxu0 0.0
        %806 = vmatpush1.msra.mxu0 0.0
        %807 = vmatprep.subr.mxu0 0.0
        %808 = vmatpush1.msra.mxu0 0.0
        %809 = vmatprep.subr.mxu0 0.0
        %810 = vmatpush1.msra.mxu0 0.0
        %811 = vmatprep.subr.mxu0 0.0
        %812 = vmatpush1.msra.mxu0 0.0
        %813 = vmatprep.subr.mxu0 0.0
        %v814 = vand.u32 %v170, 4294901760
        %v815 = vsub.f32 %v170, %v814
        %816 = vmatpush1.msra.mxu0 %v815
        %817 = vmatprep.subr.mxu0 0.0
        %818 = vmatpush2.msra.mxu0 0.0
        %819 = vmatprep.subr.mxu0 0.0
        %820 = vmatpush2.msra.mxu0 0.0
        %821 = vmatprep.subr.mxu0 0.0
        %822 = vmatpush2.msra.mxu0 0.0
        %823 = vmatprep.subr.mxu0 0.0
        %824 = vmatpush2.msra.mxu0 0.0
        %825 = vmatprep.subr.mxu0 0.0
        %826 = vmatpush2.msra.mxu0 0.0
        %827 = vmatprep.subr.mxu0 0.0
        %828 = vmatpush2.msra.mxu0 0.0
        %829 = vmatprep.subr.mxu0 0.0
        %830 = vmatpush2.msra.mxu0 0.0
        %831 = vmatprep.subr.mxu0 0.0
        %832 = vmatpush2.msra.mxu0 0.0
        %833 = vmatprep.subr.mxu0 0.0
        %834 = vmatpush2.msra.mxu0 0.0
        %835 = vmatprep.subr.mxu0 0.0
        %836 = vmatpush2.msra.mxu0 0.0
        %837 = vmatprep.subr.mxu0 0.0
        %838 = vmatpush2.msra.mxu0 0.0
        %839 = vmatprep.subr.mxu0 0.0
        %840 = vmatpush2.msra.mxu0 0.0
        %841 = vmatprep.subr.mxu0 0.0
        %842 = vmatpush2.msra.mxu0 0.0
        %843 = vmatprep.subr.mxu0 0.0
        %844 = vmatpush2.msra.mxu0 0.0
        %845 = vmatprep.subr.mxu0 0.0
        %846 = vmatpush2.msra.mxu0 0.0
        %847 = vmatprep.subr.mxu0 0.0
        %848 = vmatpush2.msra.mxu0 0.0
        %849 = vmatprep.mubr.f32.mxu0 0.0
        %v850 = vand.u32 %v173, 4294901760
        %v851 = vsub.f32 %v173, %v850
        %852 = vmatmul.mubr.f32.gmra.mxu0 %v851
        %v853 = vpop.f32.mrf.mxu0
        %v854 = vadd.f32 %v636, %v853
        %v855 = vpop.f32.mrf.mxu0
        %856 = vmatprep.mubr.f32.mxu0 0.0
        %v857 = vand.u32 %v176, 4294901760
        %v858 = vsub.f32 %v176, %v857
        %859 = vmatmul.mubr.f32.gmra.mxu0 %v858
        %v860 = vpop.f32.mrf.mxu0
        %v861 = vadd.f32 %v642, %v860
        %v862 = vpop.f32.mrf.mxu0
        %863 = vmatprep.mubr.f32.mxu0 0.0
        %v864 = vand.u32 %v179, 4294901760
        %v865 = vsub.f32 %v179, %v864
        %866 = vmatmul.mubr.f32.gmra.mxu0 %v865
        %v867 = vpop.f32.mrf.mxu0
        %v868 = vadd.f32 %v648, %v867
        %v869 = vpop.f32.mrf.mxu0
        %870 = vmatprep.mubr.f32.mxu0 0.0
        %v871 = vand.u32 %v182, 4294901760
        %v872 = vsub.f32 %v182, %v871
        %873 = vmatmul.mubr.f32.gmra.mxu0 %v872
        %v874 = vpop.f32.mrf.mxu0
        %v875 = vadd.f32 %v654, %v874
        %v876 = vpop.f32.mrf.mxu0
        %877 = vmatprep.mubr.f32.mxu0 0.0
        %v878 = vand.u32 %v185, 4294901760
        %v879 = vsub.f32 %v185, %v878
        %880 = vmatmul.mubr.f32.gmra.mxu0 %v879
        %v881 = vpop.f32.mrf.mxu0
        %v882 = vadd.f32 %v660, %v881
        %v883 = vpop.f32.mrf.mxu0
        %884 = vmatprep.mubr.f32.mxu0 0.0
        %v885 = vand.u32 %v188, 4294901760
        %v886 = vsub.f32 %v188, %v885
        %887 = vmatmul.mubr.f32.gmra.mxu0 %v886
        %v888 = vpop.f32.mrf.mxu0
        %v889 = vadd.f32 %v666, %v888
        %v890 = vpop.f32.mrf.mxu0
        %891 = vmatprep.mubr.f32.mxu0 0.0
        %v892 = vand.u32 %v191, 4294901760
        %v893 = vsub.f32 %v191, %v892
        %894 = vmatmul.mubr.f32.gmra.mxu0 %v893
        %v895 = vpop.f32.mrf.mxu0
        %v896 = vadd.f32 %v672, %v895
        %v897 = vpop.f32.mrf.mxu0
        %898 = vmatprep.mubr.f32.mxu0 0.0
        %v899 = vand.u32 %v194, 4294901760
        %v900 = vsub.f32 %v194, %v899
        %901 = vmatmul.mubr.f32.gmra.mxu0 %v900
        %v902 = vpop.f32.mrf.mxu0
        %v903 = vadd.f32 %v678, %v902
        %v904 = vpop.f32.mrf.mxu0
        %905 = vmatprep.mubr.f32.mxu0 0.0
        %v906 = vand.u32 %v197, 4294901760
        %v907 = vsub.f32 %v197, %v906
        %908 = vmatmul.mubr.f32.gmra.mxu0 %v907
        %v909 = vpop.f32.mrf.mxu0
        %v910 = vadd.f32 %v684, %v909
        %v911 = vpop.f32.mrf.mxu0
        %912 = vmatprep.mubr.f32.mxu0 0.0
        %v913 = vand.u32 %v200, 4294901760
        %v914 = vsub.f32 %v200, %v913
        %915 = vmatmul.mubr.f32.gmra.mxu0 %v914
        %v916 = vpop.f32.mrf.mxu0
        %v917 = vadd.f32 %v690, %v916
        %v918 = vpop.f32.mrf.mxu0
        %919 = vmatprep.mubr.f32.mxu0 0.0
        %v920 = vand.u32 %v203, 4294901760
        %v921 = vsub.f32 %v203, %v920
        %922 = vmatmul.mubr.f32.gmra.mxu0 %v921
        %v923 = vpop.f32.mrf.mxu0
        %v924 = vadd.f32 %v696, %v923
        %v925 = vpop.f32.mrf.mxu0
        %926 = vmatprep.mubr.f32.mxu0 0.0
        %v927 = vand.u32 %v206, 4294901760
        %v928 = vsub.f32 %v206, %v927
        %929 = vmatmul.mubr.f32.gmra.mxu0 %v928
        %v930 = vpop.f32.mrf.mxu0
        %v931 = vadd.f32 %v702, %v930
        %v932 = vpop.f32.mrf.mxu0
        %933 = vmatprep.mubr.f32.mxu0 0.0
        %v934 = vand.u32 %v209, 4294901760
        %v935 = vsub.f32 %v209, %v934
        %936 = vmatmul.mubr.f32.gmra.mxu0 %v935
        %v937 = vpop.f32.mrf.mxu0
        %v938 = vadd.f32 %v708, %v937
        %v939 = vpop.f32.mrf.mxu0
        %940 = vmatprep.mubr.f32.mxu0 0.0
        %v941 = vand.u32 %v212, 4294901760
        %v942 = vsub.f32 %v212, %v941
        %943 = vmatmul.mubr.f32.gmra.mxu0 %v942
        %v944 = vpop.f32.mrf.mxu0
        %v945 = vadd.f32 %v714, %v944
        %v946 = vpop.f32.mrf.mxu0
        %947 = vmatprep.mubr.f32.mxu0 0.0
        %v948 = vand.u32 %v215, 4294901760
        %v949 = vsub.f32 %v215, %v948
        %950 = vmatmul.mubr.f32.gmra.mxu0 %v949
        %v951 = vpop.f32.mrf.mxu0
        %v952 = vadd.f32 %v720, %v951
        %v953 = vpop.f32.mrf.mxu0
        %954 = vmatprep.mubr.f32.mxu0 0.0
        %v955 = vand.u32 %v218, 4294901760
        %v956 = vsub.f32 %v218, %v955
        %957 = vmatmul.mubr.f32.gmra.mxu0 %v956
        %v958 = vpop.f32.mrf.mxu0
        %v959 = vadd.f32 %v726, %v958
        %v960 = vpop.f32.mrf.mxu0
        %961 = vmatprep.mubr.f32.mxu0 0.0
        %v962 = vand.u32 %v221, 4294901760
        %v963 = vsub.f32 %v221, %v962
        %964 = vmatmul.mubr.f32.gmra.mxu0 %v963
        %v965 = vpop.f32.mrf.mxu0
        %v966 = vadd.f32 %v732, %v965
        %v967 = vpop.f32.mrf.mxu0
        %968 = vmatprep.mubr.f32.mxu0 0.0
        %v969 = vand.u32 %v224, 4294901760
        %v970 = vsub.f32 %v224, %v969
        %971 = vmatmul.mubr.f32.gmra.mxu0 %v970
        %v972 = vpop.f32.mrf.mxu0
        %v973 = vadd.f32 %v738, %v972
        %v974 = vpop.f32.mrf.mxu0
        %975 = vmatprep.mubr.f32.mxu0 0.0
        %v976 = vand.u32 %v227, 4294901760
        %v977 = vsub.f32 %v227, %v976
        %978 = vmatmul.mubr.f32.gmra.mxu0 %v977
        %v979 = vpop.f32.mrf.mxu0
        %v980 = vadd.f32 %v744, %v979
        %v981 = vpop.f32.mrf.mxu0
        %982 = vmatprep.mubr.f32.mxu0 0.0
        %v983 = vand.u32 %v230, 4294901760
        %v984 = vsub.f32 %v230, %v983
        %985 = vmatmul.mubr.f32.gmra.mxu0 %v984
        %v986 = vpop.f32.mrf.mxu0
        %v987 = vadd.f32 %v750, %v986
        %v988 = vpop.f32.mrf.mxu0
        %989 = vmatprep.mubr.f32.mxu0 0.0
        %v990 = vand.u32 %v233, 4294901760
        %v991 = vsub.f32 %v233, %v990
        %992 = vmatmul.mubr.f32.gmra.mxu0 %v991
        %v993 = vpop.f32.mrf.mxu0
        %v994 = vadd.f32 %v756, %v993
        %v995 = vpop.f32.mrf.mxu0
        %996 = vmatprep.mubr.f32.mxu0 0.0
        %v997 = vand.u32 %v236, 4294901760
        %v998 = vsub.f32 %v236, %v997
        %999 = vmatmul.mubr.f32.gmra.mxu0 %v998
        %v1000 = vpop.f32.mrf.mxu0
        %v1001 = vadd.f32 %v762, %v1000
        %v1002 = vpop.f32.mrf.mxu0
        %1003 = vmatprep.mubr.f32.mxu0 0.0
        %v1004 = vand.u32 %v239, 4294901760
        %v1005 = vsub.f32 %v239, %v1004
        %1006 = vmatmul.mubr.f32.gmra.mxu0 %v1005
        %v1007 = vpop.f32.mrf.mxu0
        %v1008 = vadd.f32 %v768, %v1007
        %v1009 = vpop.f32.mrf.mxu0
        %1010 = vmatprep.mubr.f32.mxu0 0.0
        %v1011 = vand.u32 %v242, 4294901760
        %v1012 = vsub.f32 %v242, %v1011
        %1013 = vmatmul.mubr.f32.gmra.mxu0 %v1012
        %v1014 = vpop.f32.mrf.mxu0
        %v1015 = vadd.f32 %v774, %v1014
        %v1016 = vpop.f32.mrf.mxu0
        %1017 = vmatprep.mubr.f32.mxu0 0.0
        %v1018 = vand.u32 %v245, 4294901760
        %v1019 = vsub.f32 %v245, %v1018
        %1020 = vmatmul.mubr.f32.gmra.mxu0 %v1019
        %v1021 = vpop.f32.mrf.mxu0
        %v1022 = vadd.f32 %v780, %v1021
        %v1023 = vpop.f32.mrf.mxu0
        %1024 = vdwg.mxu0
        %1025 = vmatprep.subr.mxu0 0.0
        %1026 = vmatpush1.msra.mxu0 0.0
        %1027 = vmatprep.subr.mxu0 0.0
        %1028 = vmatpush1.msra.mxu0 0.0
        %1029 = vmatprep.subr.mxu0 0.0
        %1030 = vmatpush1.msra.mxu0 0.0
        %1031 = vmatprep.subr.mxu0 0.0
        %1032 = vmatpush1.msra.mxu0 0.0
        %1033 = vmatprep.subr.mxu0 0.0
        %1034 = vmatpush1.msra.mxu0 0.0
        %1035 = vmatprep.subr.mxu0 0.0
        %1036 = vmatpush1.msra.mxu0 0.0
        %1037 = vmatprep.subr.mxu0 0.0
        %1038 = vmatpush1.msra.mxu0 0.0
        %1039 = vmatprep.subr.mxu0 0.0
        %1040 = vmatpush1.msra.mxu0 0.0
        %1041 = vmatprep.subr.mxu0 0.0
        %1042 = vmatpush1.msra.mxu0 0.0
        %1043 = vmatprep.subr.mxu0 0.0
        %1044 = vmatpush1.msra.mxu0 0.0
        %1045 = vmatprep.subr.mxu0 0.0
        %1046 = vmatpush1.msra.mxu0 0.0
        %1047 = vmatprep.subr.mxu0 0.0
        %1048 = vmatpush1.msra.mxu0 0.0
        %1049 = vmatprep.subr.mxu0 0.0
        %1050 = vmatpush1.msra.mxu0 0.0
        %1051 = vmatprep.subr.mxu0 0.0
        %1052 = vmatpush1.msra.mxu0 0.0
        %1053 = vmatprep.subr.mxu0 0.0
        %1054 = vmatpush1.msra.mxu0 0.0
        %1055 = vmatprep.subr.mxu0 0.0
        %v1056 = vand.u32 %v170, 4294901760
        %1057 = vmatpush1.msra.mxu0 %v1056
        %1058 = vmatprep.subr.mxu0 0.0
        %1059 = vmatpush2.msra.mxu0 0.0
        %1060 = vmatprep.subr.mxu0 0.0
        %1061 = vmatpush2.msra.mxu0 0.0
        %1062 = vmatprep.subr.mxu0 0.0
        %1063 = vmatpush2.msra.mxu0 0.0
        %1064 = vmatprep.subr.mxu0 0.0
        %1065 = vmatpush2.msra.mxu0 0.0
        %1066 = vmatprep.subr.mxu0 0.0
        %1067 = vmatpush2.msra.mxu0 0.0
        %1068 = vmatprep.subr.mxu0 0.0
        %1069 = vmatpush2.msra.mxu0 0.0
        %1070 = vmatprep.subr.mxu0 0.0
        %1071 = vmatpush2.msra.mxu0 0.0
        %1072 = vmatprep.subr.mxu0 0.0
        %1073 = vmatpush2.msra.mxu0 0.0
        %1074 = vmatprep.subr.mxu0 0.0
        %1075 = vmatpush2.msra.mxu0 0.0
        %1076 = vmatprep.subr.mxu0 0.0
        %1077 = vmatpush2.msra.mxu0 0.0
        %1078 = vmatprep.subr.mxu0 0.0
        %1079 = vmatpush2.msra.mxu0 0.0
        %1080 = vmatprep.subr.mxu0 0.0
        %1081 = vmatpush2.msra.mxu0 0.0
        %1082 = vmatprep.subr.mxu0 0.0
        %1083 = vmatpush2.msra.mxu0 0.0
        %1084 = vmatprep.subr.mxu0 0.0
        %1085 = vmatpush2.msra.mxu0 0.0
        %1086 = vmatprep.subr.mxu0 0.0
        %1087 = vmatpush2.msra.mxu0 0.0
        %1088 = vmatprep.subr.mxu0 0.0
        %1089 = vmatpush2.msra.mxu0 0.0
        %1090 = vmatprep.mubr.f32.mxu0 0.0
        %v1091 = vand.u32 %v173, 4294901760
        %v1092 = vsub.f32 %v173, %v1091
        %v1093 = vand.u32 %v1092, 4294901760
        %1094 = vmatmul.mubr.f32.gmra.mxu0 %v1093
        %v1095 = vpop.f32.mrf.mxu0
        %v1096 = vadd.f32 %v854, %v1095
        %v1097 = vpop.f32.mrf.mxu0
        %1098 = vmatprep.mubr.f32.mxu0 0.0
        %v1099 = vand.u32 %v176, 4294901760
        %v1100 = vsub.f32 %v176, %v1099
        %v1101 = vand.u32 %v1100, 4294901760
        %1102 = vmatmul.mubr.f32.gmra.mxu0 %v1101
        %v1103 = vpop.f32.mrf.mxu0
        %v1104 = vadd.f32 %v861, %v1103
        %v1105 = vpop.f32.mrf.mxu0
        %1106 = vmatprep.mubr.f32.mxu0 0.0
        %v1107 = vand.u32 %v179, 4294901760
        %v1108 = vsub.f32 %v179, %v1107
        %v1109 = vand.u32 %v1108, 4294901760
        %1110 = vmatmul.mubr.f32.gmra.mxu0 %v1109
        %v1111 = vpop.f32.mrf.mxu0
        %v1112 = vadd.f32 %v868, %v1111
        %v1113 = vpop.f32.mrf.mxu0
        %1114 = vmatprep.mubr.f32.mxu0 0.0
        %v1115 = vand.u32 %v182, 4294901760
        %v1116 = vsub.f32 %v182, %v1115
        %v1117 = vand.u32 %v1116, 4294901760
        %1118 = vmatmul.mubr.f32.gmra.mxu0 %v1117
        %v1119 = vpop.f32.mrf.mxu0
        %v1120 = vadd.f32 %v875, %v1119
        %v1121 = vpop.f32.mrf.mxu0
        %1122 = vmatprep.mubr.f32.mxu0 0.0
        %v1123 = vand.u32 %v185, 4294901760
        %v1124 = vsub.f32 %v185, %v1123
        %v1125 = vand.u32 %v1124, 4294901760
        %1126 = vmatmul.mubr.f32.gmra.mxu0 %v1125
        %v1127 = vpop.f32.mrf.mxu0
        %v1128 = vadd.f32 %v882, %v1127
        %v1129 = vpop.f32.mrf.mxu0
        %1130 = vmatprep.mubr.f32.mxu0 0.0
        %v1131 = vand.u32 %v188, 4294901760
        %v1132 = vsub.f32 %v188, %v1131
        %v1133 = vand.u32 %v1132, 4294901760
        %1134 = vmatmul.mubr.f32.gmra.mxu0 %v1133
        %v1135 = vpop.f32.mrf.mxu0
        %v1136 = vadd.f32 %v889, %v1135
        %v1137 = vpop.f32.mrf.mxu0
        %1138 = vmatprep.mubr.f32.mxu0 0.0
        %v1139 = vand.u32 %v191, 4294901760
        %v1140 = vsub.f32 %v191, %v1139
        %v1141 = vand.u32 %v1140, 4294901760
        %1142 = vmatmul.mubr.f32.gmra.mxu0 %v1141
        %v1143 = vpop.f32.mrf.mxu0
        %v1144 = vadd.f32 %v896, %v1143
        %v1145 = vpop.f32.mrf.mxu0
        %1146 = vmatprep.mubr.f32.mxu0 0.0
        %v1147 = vand.u32 %v194, 4294901760
        %v1148 = vsub.f32 %v194, %v1147
        %v1149 = vand.u32 %v1148, 4294901760
        %1150 = vmatmul.mubr.f32.gmra.mxu0 %v1149
        %v1151 = vpop.f32.mrf.mxu0
        %v1152 = vadd.f32 %v903, %v1151
        %v1153 = vpop.f32.mrf.mxu0
        %1154 = vmatprep.mubr.f32.mxu0 0.0
        %v1155 = vand.u32 %v197, 4294901760
        %v1156 = vsub.f32 %v197, %v1155
        %v1157 = vand.u32 %v1156, 4294901760
        %1158 = vmatmul.mubr.f32.gmra.mxu0 %v1157
        %v1159 = vpop.f32.mrf.mxu0
        %v1160 = vadd.f32 %v910, %v1159
        %v1161 = vpop.f32.mrf.mxu0
        %1162 = vmatprep.mubr.f32.mxu0 0.0
        %v1163 = vand.u32 %v200, 4294901760
        %v1164 = vsub.f32 %v200, %v1163
        %v1165 = vand.u32 %v1164, 4294901760
        %1166 = vmatmul.mubr.f32.gmra.mxu0 %v1165
        %v1167 = vpop.f32.mrf.mxu0
        %v1168 = vadd.f32 %v917, %v1167
        %v1169 = vpop.f32.mrf.mxu0
        %1170 = vmatprep.mubr.f32.mxu0 0.0
        %v1171 = vand.u32 %v203, 4294901760
        %v1172 = vsub.f32 %v203, %v1171
        %v1173 = vand.u32 %v1172, 4294901760
        %1174 = vmatmul.mubr.f32.gmra.mxu0 %v1173
        %v1175 = vpop.f32.mrf.mxu0
        %v1176 = vadd.f32 %v924, %v1175
        %v1177 = vpop.f32.mrf.mxu0
        %1178 = vmatprep.mubr.f32.mxu0 0.0
        %v1179 = vand.u32 %v206, 4294901760
        %v1180 = vsub.f32 %v206, %v1179
        %v1181 = vand.u32 %v1180, 4294901760
        %1182 = vmatmul.mubr.f32.gmra.mxu0 %v1181
        %v1183 = vpop.f32.mrf.mxu0
        %v1184 = vadd.f32 %v931, %v1183
        %v1185 = vpop.f32.mrf.mxu0
        %1186 = vmatprep.mubr.f32.mxu0 0.0
        %v1187 = vand.u32 %v209, 4294901760
        %v1188 = vsub.f32 %v209, %v1187
        %v1189 = vand.u32 %v1188, 4294901760
        %1190 = vmatmul.mubr.f32.gmra.mxu0 %v1189
        %v1191 = vpop.f32.mrf.mxu0
        %v1192 = vadd.f32 %v938, %v1191
        %v1193 = vpop.f32.mrf.mxu0
        %1194 = vmatprep.mubr.f32.mxu0 0.0
        %v1195 = vand.u32 %v212, 4294901760
        %v1196 = vsub.f32 %v212, %v1195
        %v1197 = vand.u32 %v1196, 4294901760
        %1198 = vmatmul.mubr.f32.gmra.mxu0 %v1197
        %v1199 = vpop.f32.mrf.mxu0
        %v1200 = vadd.f32 %v945, %v1199
        %v1201 = vpop.f32.mrf.mxu0
        %1202 = vmatprep.mubr.f32.mxu0 0.0
        %v1203 = vand.u32 %v215, 4294901760
        %v1204 = vsub.f32 %v215, %v1203
        %v1205 = vand.u32 %v1204, 4294901760
        %1206 = vmatmul.mubr.f32.gmra.mxu0 %v1205
        %v1207 = vpop.f32.mrf.mxu0
        %v1208 = vadd.f32 %v952, %v1207
        %v1209 = vpop.f32.mrf.mxu0
        %1210 = vmatprep.mubr.f32.mxu0 0.0
        %v1211 = vand.u32 %v218, 4294901760
        %v1212 = vsub.f32 %v218, %v1211
        %v1213 = vand.u32 %v1212, 4294901760
        %1214 = vmatmul.mubr.f32.gmra.mxu0 %v1213
        %v1215 = vpop.f32.mrf.mxu0
        %v1216 = vadd.f32 %v959, %v1215
        %v1217 = vpop.f32.mrf.mxu0
        %1218 = vmatprep.mubr.f32.mxu0 0.0
        %v1219 = vand.u32 %v221, 4294901760
        %v1220 = vsub.f32 %v221, %v1219
        %v1221 = vand.u32 %v1220, 4294901760
        %1222 = vmatmul.mubr.f32.gmra.mxu0 %v1221
        %v1223 = vpop.f32.mrf.mxu0
        %v1224 = vadd.f32 %v966, %v1223
        %v1225 = vpop.f32.mrf.mxu0
        %1226 = vmatprep.mubr.f32.mxu0 0.0
        %v1227 = vand.u32 %v224, 4294901760
        %v1228 = vsub.f32 %v224, %v1227
        %v1229 = vand.u32 %v1228, 4294901760
        %1230 = vmatmul.mubr.f32.gmra.mxu0 %v1229
        %v1231 = vpop.f32.mrf.mxu0
        %v1232 = vadd.f32 %v973, %v1231
        %v1233 = vpop.f32.mrf.mxu0
        %1234 = vmatprep.mubr.f32.mxu0 0.0
        %v1235 = vand.u32 %v227, 4294901760
        %v1236 = vsub.f32 %v227, %v1235
        %v1237 = vand.u32 %v1236, 4294901760
        %1238 = vmatmul.mubr.f32.gmra.mxu0 %v1237
        %v1239 = vpop.f32.mrf.mxu0
        %v1240 = vadd.f32 %v980, %v1239
        %v1241 = vpop.f32.mrf.mxu0
        %1242 = vmatprep.mubr.f32.mxu0 0.0
        %v1243 = vand.u32 %v230, 4294901760
        %v1244 = vsub.f32 %v230, %v1243
        %v1245 = vand.u32 %v1244, 4294901760
        %1246 = vmatmul.mubr.f32.gmra.mxu0 %v1245
        %v1247 = vpop.f32.mrf.mxu0
        %v1248 = vadd.f32 %v987, %v1247
        %v1249 = vpop.f32.mrf.mxu0
        %1250 = vmatprep.mubr.f32.mxu0 0.0
        %v1251 = vand.u32 %v233, 4294901760
        %v1252 = vsub.f32 %v233, %v1251
        %v1253 = vand.u32 %v1252, 4294901760
        %1254 = vmatmul.mubr.f32.gmra.mxu0 %v1253
        %v1255 = vpop.f32.mrf.mxu0
        %v1256 = vadd.f32 %v994, %v1255
        %v1257 = vpop.f32.mrf.mxu0
        %1258 = vmatprep.mubr.f32.mxu0 0.0
        %v1259 = vand.u32 %v236, 4294901760
        %v1260 = vsub.f32 %v236, %v1259
        %v1261 = vand.u32 %v1260, 4294901760
        %1262 = vmatmul.mubr.f32.gmra.mxu0 %v1261
        %v1263 = vpop.f32.mrf.mxu0
        %v1264 = vadd.f32 %v1001, %v1263
        %v1265 = vpop.f32.mrf.mxu0
        %1266 = vmatprep.mubr.f32.mxu0 0.0
        %v1267 = vand.u32 %v239, 4294901760
        %v1268 = vsub.f32 %v239, %v1267
        %v1269 = vand.u32 %v1268, 4294901760
        %1270 = vmatmul.mubr.f32.gmra.mxu0 %v1269
        %v1271 = vpop.f32.mrf.mxu0
        %v1272 = vadd.f32 %v1008, %v1271
        %v1273 = vpop.f32.mrf.mxu0
        %1274 = vmatprep.mubr.f32.mxu0 0.0
        %v1275 = vand.u32 %v242, 4294901760
        %v1276 = vsub.f32 %v242, %v1275
        %v1277 = vand.u32 %v1276, 4294901760
        %1278 = vmatmul.mubr.f32.gmra.mxu0 %v1277
        %v1279 = vpop.f32.mrf.mxu0
        %v1280 = vadd.f32 %v1015, %v1279
        %v1281 = vpop.f32.mrf.mxu0
        %1282 = vmatprep.mubr.f32.mxu0 0.0
        %v1283 = vand.u32 %v245, 4294901760
        %v1284 = vsub.f32 %v245, %v1283
        %v1285 = vand.u32 %v1284, 4294901760
        %1286 = vmatmul.mubr.f32.gmra.mxu0 %v1285
        %v1287 = vpop.f32.mrf.mxu0
        %v1288 = vadd.f32 %v1022, %v1287
        %v1289 = vpop.f32.mrf.mxu0
        %1290 = vdwg.mxu0
        %1291 = vmatprep.subr.mxu0 0.0
        %1292 = vmatpush1.msra.mxu0 0.0
        %1293 = vmatprep.subr.mxu0 0.0
        %1294 = vmatpush1.msra.mxu0 0.0
        %1295 = vmatprep.subr.mxu0 0.0
        %1296 = vmatpush1.msra.mxu0 0.0
        %1297 = vmatprep.subr.mxu0 0.0
        %1298 = vmatpush1.msra.mxu0 0.0
        %1299 = vmatprep.subr.mxu0 0.0
        %1300 = vmatpush1.msra.mxu0 0.0
        %1301 = vmatprep.subr.mxu0 0.0
        %1302 = vmatpush1.msra.mxu0 0.0
        %1303 = vmatprep.subr.mxu0 0.0
        %1304 = vmatpush1.msra.mxu0 0.0
        %1305 = vmatprep.subr.mxu0 0.0
        %1306 = vmatpush1.msra.mxu0 0.0
        %1307 = vmatprep.subr.mxu0 0.0
        %1308 = vmatpush1.msra.mxu0 0.0
        %1309 = vmatprep.subr.mxu0 0.0
        %1310 = vmatpush1.msra.mxu0 0.0
        %1311 = vmatprep.subr.mxu0 0.0
        %1312 = vmatpush1.msra.mxu0 0.0
        %1313 = vmatprep.subr.mxu0 0.0
        %1314 = vmatpush1.msra.mxu0 0.0
        %1315 = vmatprep.subr.mxu0 0.0
        %1316 = vmatpush1.msra.mxu0 0.0
        %1317 = vmatprep.subr.mxu0 0.0
        %1318 = vmatpush1.msra.mxu0 0.0
        %1319 = vmatprep.subr.mxu0 0.0
        %1320 = vmatpush1.msra.mxu0 0.0
        %1321 = vmatprep.subr.mxu0 0.0
        %v1322 = vand.u32 %v170, 4294901760
        %v1323 = vsub.f32 %v170, %v1322
        %v1324 = vand.u32 %v1323, 4294901760
        %1325 = vmatpush1.msra.mxu0 %v1324
        %1326 = vmatprep.subr.mxu0 0.0
        %1327 = vmatpush2.msra.mxu0 0.0
        %1328 = vmatprep.subr.mxu0 0.0
        %1329 = vmatpush2.msra.mxu0 0.0
        %1330 = vmatprep.subr.mxu0 0.0
        %1331 = vmatpush2.msra.mxu0 0.0
        %1332 = vmatprep.subr.mxu0 0.0
        %1333 = vmatpush2.msra.mxu0 0.0
        %1334 = vmatprep.subr.mxu0 0.0
        %1335 = vmatpush2.msra.mxu0 0.0
        %1336 = vmatprep.subr.mxu0 0.0
        %1337 = vmatpush2.msra.mxu0 0.0
        %1338 = vmatprep.subr.mxu0 0.0
        %1339 = vmatpush2.msra.mxu0 0.0
        %1340 = vmatprep.subr.mxu0 0.0
        %1341 = vmatpush2.msra.mxu0 0.0
        %1342 = vmatprep.subr.mxu0 0.0
        %1343 = vmatpush2.msra.mxu0 0.0
        %1344 = vmatprep.subr.mxu0 0.0
        %1345 = vmatpush2.msra.mxu0 0.0
        %1346 = vmatprep.subr.mxu0 0.0
        %1347 = vmatpush2.msra.mxu0 0.0
        %1348 = vmatprep.subr.mxu0 0.0
        %1349 = vmatpush2.msra.mxu0 0.0
        %1350 = vmatprep.subr.mxu0 0.0
        %1351 = vmatpush2.msra.mxu0 0.0
        %1352 = vmatprep.subr.mxu0 0.0
        %1353 = vmatpush2.msra.mxu0 0.0
        %1354 = vmatprep.subr.mxu0 0.0
        %1355 = vmatpush2.msra.mxu0 0.0
        %1356 = vmatprep.subr.mxu0 0.0
        %1357 = vmatpush2.msra.mxu0 0.0
        %1358 = vmatprep.mubr.f32.mxu0 0.0
        %v1359 = vand.u32 %v173, 4294901760
        %1360 = vmatmul.mubr.f32.gmra.mxu0 %v1359
        %v1361 = vpop.f32.mrf.mxu0
        %v1362 = vadd.f32 %v1096, %v1361
        %v1363 = vpop.f32.mrf.mxu0
        %1364 = vmatprep.mubr.f32.mxu0 0.0
        %v1365 = vand.u32 %v176, 4294901760
        %1366 = vmatmul.mubr.f32.gmra.mxu0 %v1365
        %v1367 = vpop.f32.mrf.mxu0
        %v1368 = vadd.f32 %v1104, %v1367
        %v1369 = vpop.f32.mrf.mxu0
        %1370 = vmatprep.mubr.f32.mxu0 0.0
        %v1371 = vand.u32 %v179, 4294901760
        %1372 = vmatmul.mubr.f32.gmra.mxu0 %v1371
        %v1373 = vpop.f32.mrf.mxu0
        %v1374 = vadd.f32 %v1112, %v1373
        %v1375 = vpop.f32.mrf.mxu0
        %1376 = vmatprep.mubr.f32.mxu0 0.0
        %v1377 = vand.u32 %v182, 4294901760
        %1378 = vmatmul.mubr.f32.gmra.mxu0 %v1377
        %v1379 = vpop.f32.mrf.mxu0
        %v1380 = vadd.f32 %v1120, %v1379
        %v1381 = vpop.f32.mrf.mxu0
        %1382 = vmatprep.mubr.f32.mxu0 0.0
        %v1383 = vand.u32 %v185, 4294901760
        %1384 = vmatmul.mubr.f32.gmra.mxu0 %v1383
        %v1385 = vpop.f32.mrf.mxu0
        %v1386 = vadd.f32 %v1128, %v1385
        %v1387 = vpop.f32.mrf.mxu0
        %1388 = vmatprep.mubr.f32.mxu0 0.0
        %v1389 = vand.u32 %v188, 4294901760
        %1390 = vmatmul.mubr.f32.gmra.mxu0 %v1389
        %v1391 = vpop.f32.mrf.mxu0
        %v1392 = vadd.f32 %v1136, %v1391
        %v1393 = vpop.f32.mrf.mxu0
        %1394 = vmatprep.mubr.f32.mxu0 0.0
        %v1395 = vand.u32 %v191, 4294901760
        %1396 = vmatmul.mubr.f32.gmra.mxu0 %v1395
        %v1397 = vpop.f32.mrf.mxu0
        %v1398 = vadd.f32 %v1144, %v1397
        %v1399 = vpop.f32.mrf.mxu0
        %1400 = vmatprep.mubr.f32.mxu0 0.0
        %v1401 = vand.u32 %v194, 4294901760
        %1402 = vmatmul.mubr.f32.gmra.mxu0 %v1401
        %v1403 = vpop.f32.mrf.mxu0
        %v1404 = vadd.f32 %v1152, %v1403
        %v1405 = vpop.f32.mrf.mxu0
        %1406 = vmatprep.mubr.f32.mxu0 0.0
        %v1407 = vand.u32 %v197, 4294901760
        %1408 = vmatmul.mubr.f32.gmra.mxu0 %v1407
        %v1409 = vpop.f32.mrf.mxu0
        %v1410 = vadd.f32 %v1160, %v1409
        %v1411 = vpop.f32.mrf.mxu0
        %1412 = vmatprep.mubr.f32.mxu0 0.0
        %v1413 = vand.u32 %v200, 4294901760
        %1414 = vmatmul.mubr.f32.gmra.mxu0 %v1413
        %v1415 = vpop.f32.mrf.mxu0
        %v1416 = vadd.f32 %v1168, %v1415
        %v1417 = vpop.f32.mrf.mxu0
        %1418 = vmatprep.mubr.f32.mxu0 0.0
        %v1419 = vand.u32 %v203, 4294901760
        %1420 = vmatmul.mubr.f32.gmra.mxu0 %v1419
        %v1421 = vpop.f32.mrf.mxu0
        %v1422 = vadd.f32 %v1176, %v1421
        %v1423 = vpop.f32.mrf.mxu0
        %1424 = vmatprep.mubr.f32.mxu0 0.0
        %v1425 = vand.u32 %v206, 4294901760
        %1426 = vmatmul.mubr.f32.gmra.mxu0 %v1425
        %v1427 = vpop.f32.mrf.mxu0
        %v1428 = vadd.f32 %v1184, %v1427
        %v1429 = vpop.f32.mrf.mxu0
        %1430 = vmatprep.mubr.f32.mxu0 0.0
        %v1431 = vand.u32 %v209, 4294901760
        %1432 = vmatmul.mubr.f32.gmra.mxu0 %v1431
        %v1433 = vpop.f32.mrf.mxu0
        %v1434 = vadd.f32 %v1192, %v1433
        %v1435 = vpop.f32.mrf.mxu0
        %1436 = vmatprep.mubr.f32.mxu0 0.0
        %v1437 = vand.u32 %v212, 4294901760
        %1438 = vmatmul.mubr.f32.gmra.mxu0 %v1437
        %v1439 = vpop.f32.mrf.mxu0
        %v1440 = vadd.f32 %v1200, %v1439
        %v1441 = vpop.f32.mrf.mxu0
        %1442 = vmatprep.mubr.f32.mxu0 0.0
        %v1443 = vand.u32 %v215, 4294901760
        %1444 = vmatmul.mubr.f32.gmra.mxu0 %v1443
        %v1445 = vpop.f32.mrf.mxu0
        %v1446 = vadd.f32 %v1208, %v1445
        %v1447 = vpop.f32.mrf.mxu0
        %1448 = vmatprep.mubr.f32.mxu0 0.0
        %v1449 = vand.u32 %v218, 4294901760
        %1450 = vmatmul.mubr.f32.gmra.mxu0 %v1449
        %v1451 = vpop.f32.mrf.mxu0
        %v1452 = vadd.f32 %v1216, %v1451
        %v1453 = vpop.f32.mrf.mxu0
        %1454 = vmatprep.mubr.f32.mxu0 0.0
        %v1455 = vand.u32 %v221, 4294901760
        %1456 = vmatmul.mubr.f32.gmra.mxu0 %v1455
        %v1457 = vpop.f32.mrf.mxu0
        %v1458 = vadd.f32 %v1224, %v1457
        %v1459 = vpop.f32.mrf.mxu0
        %1460 = vmatprep.mubr.f32.mxu0 0.0
        %v1461 = vand.u32 %v224, 4294901760
        %1462 = vmatmul.mubr.f32.gmra.mxu0 %v1461
        %v1463 = vpop.f32.mrf.mxu0
        %v1464 = vadd.f32 %v1232, %v1463
        %v1465 = vpop.f32.mrf.mxu0
        %1466 = vmatprep.mubr.f32.mxu0 0.0
        %v1467 = vand.u32 %v227, 4294901760
        %1468 = vmatmul.mubr.f32.gmra.mxu0 %v1467
        %v1469 = vpop.f32.mrf.mxu0
        %v1470 = vadd.f32 %v1240, %v1469
        %v1471 = vpop.f32.mrf.mxu0
        %1472 = vmatprep.mubr.f32.mxu0 0.0
        %v1473 = vand.u32 %v230, 4294901760
        %1474 = vmatmul.mubr.f32.gmra.mxu0 %v1473
        %v1475 = vpop.f32.mrf.mxu0
        %v1476 = vadd.f32 %v1248, %v1475
        %v1477 = vpop.f32.mrf.mxu0
        %1478 = vmatprep.mubr.f32.mxu0 0.0
        %v1479 = vand.u32 %v233, 4294901760
        %1480 = vmatmul.mubr.f32.gmra.mxu0 %v1479
        %v1481 = vpop.f32.mrf.mxu0
        %v1482 = vadd.f32 %v1256, %v1481
        %v1483 = vpop.f32.mrf.mxu0
        %1484 = vmatprep.mubr.f32.mxu0 0.0
        %v1485 = vand.u32 %v236, 4294901760
        %1486 = vmatmul.mubr.f32.gmra.mxu0 %v1485
        %v1487 = vpop.f32.mrf.mxu0
        %v1488 = vadd.f32 %v1264, %v1487
        %v1489 = vpop.f32.mrf.mxu0
        %1490 = vmatprep.mubr.f32.mxu0 0.0
        %v1491 = vand.u32 %v239, 4294901760
        %1492 = vmatmul.mubr.f32.gmra.mxu0 %v1491
        %v1493 = vpop.f32.mrf.mxu0
        %v1494 = vadd.f32 %v1272, %v1493
        %v1495 = vpop.f32.mrf.mxu0
        %1496 = vmatprep.mubr.f32.mxu0 0.0
        %v1497 = vand.u32 %v242, 4294901760
        %1498 = vmatmul.mubr.f32.gmra.mxu0 %v1497
        %v1499 = vpop.f32.mrf.mxu0
        %v1500 = vadd.f32 %v1280, %v1499
        %v1501 = vpop.f32.mrf.mxu0
        %1502 = vmatprep.mubr.f32.mxu0 0.0
        %v1503 = vand.u32 %v245, 4294901760
        %1504 = vmatmul.mubr.f32.gmra.mxu0 %v1503
        %v1505 = vpop.f32.mrf.mxu0
        %v1506 = vadd.f32 %v1288, %v1505
        %v1507 = vpop.f32.mrf.mxu0
        %1508 = vdwg.mxu0
        %1509 = vmatprep.subr.mxu0 0.0
        %1510 = vmatpush1.msra.mxu0 0.0
        %1511 = vmatprep.subr.mxu0 0.0
        %1512 = vmatpush1.msra.mxu0 0.0
        %1513 = vmatprep.subr.mxu0 0.0
        %1514 = vmatpush1.msra.mxu0 0.0
        %1515 = vmatprep.subr.mxu0 0.0
        %1516 = vmatpush1.msra.mxu0 0.0
        %1517 = vmatprep.subr.mxu0 0.0
        %1518 = vmatpush1.msra.mxu0 0.0
        %1519 = vmatprep.subr.mxu0 0.0
        %1520 = vmatpush1.msra.mxu0 0.0
        %1521 = vmatprep.subr.mxu0 0.0
        %1522 = vmatpush1.msra.mxu0 0.0
        %1523 = vmatprep.subr.mxu0 0.0
        %1524 = vmatpush1.msra.mxu0 0.0
        %1525 = vmatprep.subr.mxu0 0.0
        %1526 = vmatpush1.msra.mxu0 0.0
        %1527 = vmatprep.subr.mxu0 0.0
        %1528 = vmatpush1.msra.mxu0 0.0
        %1529 = vmatprep.subr.mxu0 0.0
        %1530 = vmatpush1.msra.mxu0 0.0
        %1531 = vmatprep.subr.mxu0 0.0
        %1532 = vmatpush1.msra.mxu0 0.0
        %1533 = vmatprep.subr.mxu0 0.0
        %1534 = vmatpush1.msra.mxu0 0.0
        %1535 = vmatprep.subr.mxu0 0.0
        %1536 = vmatpush1.msra.mxu0 0.0
        %1537 = vmatprep.subr.mxu0 0.0
        %1538 = vmatpush1.msra.mxu0 0.0
        %1539 = vmatprep.subr.mxu0 0.0
        %v1540 = vand.u32 %v170, 4294901760
        %1541 = vmatpush1.msra.mxu0 %v1540
        %1542 = vmatprep.subr.mxu0 0.0
        %1543 = vmatpush2.msra.mxu0 0.0
        %1544 = vmatprep.subr.mxu0 0.0
        %1545 = vmatpush2.msra.mxu0 0.0
        %1546 = vmatprep.subr.mxu0 0.0
        %1547 = vmatpush2.msra.mxu0 0.0
        %1548 = vmatprep.subr.mxu0 0.0
        %1549 = vmatpush2.msra.mxu0 0.0
        %1550 = vmatprep.subr.mxu0 0.0
        %1551 = vmatpush2.msra.mxu0 0.0
        %1552 = vmatprep.subr.mxu0 0.0
        %1553 = vmatpush2.msra.mxu0 0.0
        %1554 = vmatprep.subr.mxu0 0.0
        %1555 = vmatpush2.msra.mxu0 0.0
        %1556 = vmatprep.subr.mxu0 0.0
        %1557 = vmatpush2.msra.mxu0 0.0
        %1558 = vmatprep.subr.mxu0 0.0
        %1559 = vmatpush2.msra.mxu0 0.0
        %1560 = vmatprep.subr.mxu0 0.0
        %1561 = vmatpush2.msra.mxu0 0.0
        %1562 = vmatprep.subr.mxu0 0.0
        %1563 = vmatpush2.msra.mxu0 0.0
        %1564 = vmatprep.subr.mxu0 0.0
        %1565 = vmatpush2.msra.mxu0 0.0
        %1566 = vmatprep.subr.mxu0 0.0
        %1567 = vmatpush2.msra.mxu0 0.0
        %1568 = vmatprep.subr.mxu0 0.0
        %1569 = vmatpush2.msra.mxu0 0.0
        %1570 = vmatprep.subr.mxu0 0.0
        %1571 = vmatpush2.msra.mxu0 0.0
        %1572 = vmatprep.subr.mxu0 0.0
        %1573 = vmatpush2.msra.mxu0 0.0
        %1574 = vmatprep.mubr.f32.mxu0 0.0
        %v1575 = vand.u32 %v173, 4294901760
        %1576 = vmatmul.mubr.f32.gmra.mxu0 %v1575
        %v1577 = vpop.f32.mrf.mxu0
        %v1578 = vadd.f32 %v1362, %v1577
        %v1579 = vpop.f32.mrf.mxu0
        %1580 = vmatprep.mubr.f32.mxu0 0.0
        %v1581 = vand.u32 %v176, 4294901760
        %1582 = vmatmul.mubr.f32.gmra.mxu0 %v1581
        %v1583 = vpop.f32.mrf.mxu0
        %v1584 = vadd.f32 %v1368, %v1583
        %v1585 = vpop.f32.mrf.mxu0
        %1586 = vmatprep.mubr.f32.mxu0 0.0
        %v1587 = vand.u32 %v179, 4294901760
        %1588 = vmatmul.mubr.f32.gmra.mxu0 %v1587
        %v1589 = vpop.f32.mrf.mxu0
        %v1590 = vadd.f32 %v1374, %v1589
        %v1591 = vpop.f32.mrf.mxu0
        %1592 = vmatprep.mubr.f32.mxu0 0.0
        %v1593 = vand.u32 %v182, 4294901760
        %1594 = vmatmul.mubr.f32.gmra.mxu0 %v1593
        %v1595 = vpop.f32.mrf.mxu0
        %v1596 = vadd.f32 %v1380, %v1595
        %v1597 = vpop.f32.mrf.mxu0
        %1598 = vmatprep.mubr.f32.mxu0 0.0
        %v1599 = vand.u32 %v185, 4294901760
        %1600 = vmatmul.mubr.f32.gmra.mxu0 %v1599
        %v1601 = vpop.f32.mrf.mxu0
        %v1602 = vadd.f32 %v1386, %v1601
        %v1603 = vpop.f32.mrf.mxu0
        %1604 = vmatprep.mubr.f32.mxu0 0.0
        %v1605 = vand.u32 %v188, 4294901760
        %1606 = vmatmul.mubr.f32.gmra.mxu0 %v1605
        %v1607 = vpop.f32.mrf.mxu0
        %v1608 = vadd.f32 %v1392, %v1607
        %v1609 = vpop.f32.mrf.mxu0
        %1610 = vmatprep.mubr.f32.mxu0 0.0
        %v1611 = vand.u32 %v191, 4294901760
        %1612 = vmatmul.mubr.f32.gmra.mxu0 %v1611
        %v1613 = vpop.f32.mrf.mxu0
        %v1614 = vadd.f32 %v1398, %v1613
        %v1615 = vpop.f32.mrf.mxu0
        %1616 = vmatprep.mubr.f32.mxu0 0.0
        %v1617 = vand.u32 %v194, 4294901760
        %1618 = vmatmul.mubr.f32.gmra.mxu0 %v1617
        %v1619 = vpop.f32.mrf.mxu0
        %v1620 = vadd.f32 %v1404, %v1619
        %v1621 = vpop.f32.mrf.mxu0
        %1622 = vmatprep.mubr.f32.mxu0 0.0
        %v1623 = vand.u32 %v197, 4294901760
        %1624 = vmatmul.mubr.f32.gmra.mxu0 %v1623
        %v1625 = vpop.f32.mrf.mxu0
        %v1626 = vadd.f32 %v1410, %v1625
        %v1627 = vpop.f32.mrf.mxu0
        %1628 = vmatprep.mubr.f32.mxu0 0.0
        %v1629 = vand.u32 %v200, 4294901760
        %1630 = vmatmul.mubr.f32.gmra.mxu0 %v1629
        %v1631 = vpop.f32.mrf.mxu0
        %v1632 = vadd.f32 %v1416, %v1631
        %v1633 = vpop.f32.mrf.mxu0
        %1634 = vmatprep.mubr.f32.mxu0 0.0
        %v1635 = vand.u32 %v203, 4294901760
        %1636 = vmatmul.mubr.f32.gmra.mxu0 %v1635
        %v1637 = vpop.f32.mrf.mxu0
        %v1638 = vadd.f32 %v1422, %v1637
        %v1639 = vpop.f32.mrf.mxu0
        %1640 = vmatprep.mubr.f32.mxu0 0.0
        %v1641 = vand.u32 %v206, 4294901760
        %1642 = vmatmul.mubr.f32.gmra.mxu0 %v1641
        %v1643 = vpop.f32.mrf.mxu0
        %v1644 = vadd.f32 %v1428, %v1643
        %v1645 = vpop.f32.mrf.mxu0
        %1646 = vmatprep.mubr.f32.mxu0 0.0
        %v1647 = vand.u32 %v209, 4294901760
        %1648 = vmatmul.mubr.f32.gmra.mxu0 %v1647
        %v1649 = vpop.f32.mrf.mxu0
        %v1650 = vadd.f32 %v1434, %v1649
        %v1651 = vpop.f32.mrf.mxu0
        %1652 = vmatprep.mubr.f32.mxu0 0.0
        %v1653 = vand.u32 %v212, 4294901760
        %1654 = vmatmul.mubr.f32.gmra.mxu0 %v1653
        %v1655 = vpop.f32.mrf.mxu0
        %v1656 = vadd.f32 %v1440, %v1655
        %v1657 = vpop.f32.mrf.mxu0
        %1658 = vmatprep.mubr.f32.mxu0 0.0
        %v1659 = vand.u32 %v215, 4294901760
        %1660 = vmatmul.mubr.f32.gmra.mxu0 %v1659
        %v1661 = vpop.f32.mrf.mxu0
        %v1662 = vadd.f32 %v1446, %v1661
        %v1663 = vpop.f32.mrf.mxu0
        %1664 = vmatprep.mubr.f32.mxu0 0.0
        %v1665 = vand.u32 %v218, 4294901760
        %1666 = vmatmul.mubr.f32.gmra.mxu0 %v1665
        %v1667 = vpop.f32.mrf.mxu0
        %v1668 = vadd.f32 %v1452, %v1667
        %v1669 = vpop.f32.mrf.mxu0
        %1670 = vmatprep.mubr.f32.mxu0 0.0
        %v1671 = vand.u32 %v221, 4294901760
        %1672 = vmatmul.mubr.f32.gmra.mxu0 %v1671
        %v1673 = vpop.f32.mrf.mxu0
        %v1674 = vadd.f32 %v1458, %v1673
        %v1675 = vpop.f32.mrf.mxu0
        %1676 = vmatprep.mubr.f32.mxu0 0.0
        %v1677 = vand.u32 %v224, 4294901760
        %1678 = vmatmul.mubr.f32.gmra.mxu0 %v1677
        %v1679 = vpop.f32.mrf.mxu0
        %v1680 = vadd.f32 %v1464, %v1679
        %v1681 = vpop.f32.mrf.mxu0
        %1682 = vmatprep.mubr.f32.mxu0 0.0
        %v1683 = vand.u32 %v227, 4294901760
        %1684 = vmatmul.mubr.f32.gmra.mxu0 %v1683
        %v1685 = vpop.f32.mrf.mxu0
        %v1686 = vadd.f32 %v1470, %v1685
        %v1687 = vpop.f32.mrf.mxu0
        %1688 = vmatprep.mubr.f32.mxu0 0.0
        %v1689 = vand.u32 %v230, 4294901760
        %1690 = vmatmul.mubr.f32.gmra.mxu0 %v1689
        %v1691 = vpop.f32.mrf.mxu0
        %v1692 = vadd.f32 %v1476, %v1691
        %v1693 = vpop.f32.mrf.mxu0
        %1694 = vmatprep.mubr.f32.mxu0 0.0
        %v1695 = vand.u32 %v233, 4294901760
        %1696 = vmatmul.mubr.f32.gmra.mxu0 %v1695
        %v1697 = vpop.f32.mrf.mxu0
        %v1698 = vadd.f32 %v1482, %v1697
        %v1699 = vpop.f32.mrf.mxu0
        %1700 = vmatprep.mubr.f32.mxu0 0.0
        %v1701 = vand.u32 %v236, 4294901760
        %1702 = vmatmul.mubr.f32.gmra.mxu0 %v1701
        %v1703 = vpop.f32.mrf.mxu0
        %v1704 = vadd.f32 %v1488, %v1703
        %v1705 = vpop.f32.mrf.mxu0
        %1706 = vmatprep.mubr.f32.mxu0 0.0
        %v1707 = vand.u32 %v239, 4294901760
        %1708 = vmatmul.mubr.f32.gmra.mxu0 %v1707
        %v1709 = vpop.f32.mrf.mxu0
        %v1710 = vadd.f32 %v1494, %v1709
        %v1711 = vpop.f32.mrf.mxu0
        %1712 = vmatprep.mubr.f32.mxu0 0.0
        %v1713 = vand.u32 %v242, 4294901760
        %1714 = vmatmul.mubr.f32.gmra.mxu0 %v1713
        %v1715 = vpop.f32.mrf.mxu0
        %v1716 = vadd.f32 %v1500, %v1715
        %v1717 = vpop.f32.mrf.mxu0
        %1718 = vmatprep.mubr.f32.mxu0 0.0
        %v1719 = vand.u32 %v245, 4294901760
        %1720 = vmatmul.mubr.f32.gmra.mxu0 %v1719
        %v1721 = vpop.f32.mrf.mxu0
        %v1722 = vadd.f32 %v1506, %v1721
        %v1723 = vpop.f32.mrf.mxu0
        %1724 = vdwg.mxu0
        %v1725 = vmul.f32 %v1578, 0.63661975
        %v1726 = vmul.f32 %v1584, 0.63661975
        %v1727 = vmul.f32 %v1590, 0.63661975
        %v1728 = vmul.f32 %v1596, 0.63661975
        %v1729 = vmul.f32 %v1602, 0.63661975
        %v1730 = vmul.f32 %v1608, 0.63661975
        %v1731 = vmul.f32 %v1614, 0.63661975
        %v1732 = vmul.f32 %v1620, 0.63661975
        %v1733 = vmul.f32 %v1626, 0.63661975
        %v1734 = vmul.f32 %v1632, 0.63661975
        %v1735 = vmul.f32 %v1638, 0.63661975
        %v1736 = vmul.f32 %v1644, 0.63661975
        %v1737 = vmul.f32 %v1650, 0.63661975
        %v1738 = vmul.f32 %v1656, 0.63661975
        %v1739 = vmul.f32 %v1662, 0.63661975
        %v1740 = vmul.f32 %v1668, 0.63661975
        %v1741 = vmul.f32 %v1674, 0.63661975
        %v1742 = vmul.f32 %v1680, 0.63661975
        %v1743 = vmul.f32 %v1686, 0.63661975
        %v1744 = vmul.f32 %v1692, 0.63661975
        %v1745 = vmul.f32 %v1698, 0.63661975
        %v1746 = vmul.f32 %v1704, 0.63661975
        %v1747 = vmul.f32 %v1710, 0.63661975
        %v1748 = vmul.f32 %v1716, 0.63661975
        %v1749 = vmul.f32 %v1722, 0.63661975
        %v1750 = vadd.f32 %v1725, 0.5
        %v1751 = vadd.f32 %v1726, 0.5
        %v1752 = vadd.f32 %v1727, 0.5
        %v1753 = vadd.f32 %v1728, 0.5
        %v1754 = vadd.f32 %v1729, 0.5
        %v1755 = vadd.f32 %v1730, 0.5
        %v1756 = vadd.f32 %v1731, 0.5
        %v1757 = vadd.f32 %v1732, 0.5
        %v1758 = vadd.f32 %v1733, 0.5
        %v1759 = vadd.f32 %v1734, 0.5
        %v1760 = vadd.f32 %v1735, 0.5
        %v1761 = vadd.f32 %v1736, 0.5
        %v1762 = vadd.f32 %v1737, 0.5
        %v1763 = vadd.f32 %v1738, 0.5
        %v1764 = vadd.f32 %v1739, 0.5
        %v1765 = vadd.f32 %v1740, 0.5
        %v1766 = vadd.f32 %v1741, 0.5
        %v1767 = vadd.f32 %v1742, 0.5
        %v1768 = vadd.f32 %v1743, 0.5
        %v1769 = vadd.f32 %v1744, 0.5
        %v1770 = vadd.f32 %v1745, 0.5
        %v1771 = vadd.f32 %v1746, 0.5
        %v1772 = vadd.f32 %v1747, 0.5
        %v1773 = vadd.f32 %v1748, 0.5
        %v1774 = vadd.f32 %v1749, 0.5
        %v1775 = vfloor.f32 %v1750
        %v1776 = vfloor.f32 %v1751
        %v1777 = vfloor.f32 %v1752
        %v1778 = vfloor.f32 %v1753
        %v1779 = vfloor.f32 %v1754
        %v1780 = vfloor.f32 %v1755
        %v1781 = vfloor.f32 %v1756
        %v1782 = vfloor.f32 %v1757
        %v1783 = vfloor.f32 %v1758
        %v1784 = vfloor.f32 %v1759
        %v1785 = vfloor.f32 %v1760
        %v1786 = vfloor.f32 %v1761
        %v1787 = vfloor.f32 %v1762
        %v1788 = vfloor.f32 %v1763
        %v1789 = vfloor.f32 %v1764
        %v1790 = vfloor.f32 %v1765
        %v1791 = vfloor.f32 %v1766
        %v1792 = vfloor.f32 %v1767
        %v1793 = vfloor.f32 %v1768
        %v1794 = vfloor.f32 %v1769
        %v1795 = vfloor.f32 %v1770
        %v1796 = vfloor.f32 %v1771
        %v1797 = vfloor.f32 %v1772
        %v1798 = vfloor.f32 %v1773
        %v1799 = vfloor.f32 %v1774
        %v1800 = vcvt.f32.s32.to.zero.pseudo %v1775
        %v1801 = vcvt.f32.s32.to.zero.pseudo %v1776
        %v1802 = vcvt.f32.s32.to.zero.pseudo %v1777
        %v1803 = vcvt.f32.s32.to.zero.pseudo %v1778
        %v1804 = vcvt.f32.s32.to.zero.pseudo %v1779
        %v1805 = vcvt.f32.s32.to.zero.pseudo %v1780
        %v1806 = vcvt.f32.s32.to.zero.pseudo %v1781
        %v1807 = vcvt.f32.s32.to.zero.pseudo %v1782
        %v1808 = vcvt.f32.s32.to.zero.pseudo %v1783
        %v1809 = vcvt.f32.s32.to.zero.pseudo %v1784
        %v1810 = vcvt.f32.s32.to.zero.pseudo %v1785
        %v1811 = vcvt.f32.s32.to.zero.pseudo %v1786
        %v1812 = vcvt.f32.s32.to.zero.pseudo %v1787
        %v1813 = vcvt.f32.s32.to.zero.pseudo %v1788
        %v1814 = vcvt.f32.s32.to.zero.pseudo %v1789
        %v1815 = vcvt.f32.s32.to.zero.pseudo %v1790
        %v1816 = vcvt.f32.s32.to.zero.pseudo %v1791
        %v1817 = vcvt.f32.s32.to.zero.pseudo %v1792
        %v1818 = vcvt.f32.s32.to.zero.pseudo %v1793
        %v1819 = vcvt.f32.s32.to.zero.pseudo %v1794
        %v1820 = vcvt.f32.s32.to.zero.pseudo %v1795
        %v1821 = vcvt.f32.s32.to.zero.pseudo %v1796
        %v1822 = vcvt.f32.s32.to.zero.pseudo %v1797
        %v1823 = vcvt.f32.s32.to.zero.pseudo %v1798
        %v1824 = vcvt.f32.s32.to.zero.pseudo %v1799
        %v1825 = vmul.f32 %v1775, 1.5707964
        %v1826 = vmul.f32 %v1776, 1.5707964
        %v1827 = vmul.f32 %v1777, 1.5707964
        %v1828 = vmul.f32 %v1778, 1.5707964
        %v1829 = vmul.f32 %v1779, 1.5707964
        %v1830 = vmul.f32 %v1780, 1.5707964
        %v1831 = vmul.f32 %v1781, 1.5707964
        %v1832 = vmul.f32 %v1782, 1.5707964
        %v1833 = vmul.f32 %v1783, 1.5707964
        %v1834 = vmul.f32 %v1784, 1.5707964
        %v1835 = vmul.f32 %v1785, 1.5707964
        %v1836 = vmul.f32 %v1786, 1.5707964
        %v1837 = vmul.f32 %v1787, 1.5707964
        %v1838 = vmul.f32 %v1788, 1.5707964
        %v1839 = vmul.f32 %v1789, 1.5707964
        %v1840 = vmul.f32 %v1790, 1.5707964
        %v1841 = vmul.f32 %v1791, 1.5707964
        %v1842 = vmul.f32 %v1792, 1.5707964
        %v1843 = vmul.f32 %v1793, 1.5707964
        %v1844 = vmul.f32 %v1794, 1.5707964
        %v1845 = vmul.f32 %v1795, 1.5707964
        %v1846 = vmul.f32 %v1796, 1.5707964
        %v1847 = vmul.f32 %v1797, 1.5707964
        %v1848 = vmul.f32 %v1798, 1.5707964
        %v1849 = vmul.f32 %v1799, 1.5707964
        %v1850 = vsub.f32 %v1578, %v1825
        %v1851 = vsub.f32 %v1584, %v1826
        %v1852 = vsub.f32 %v1590, %v1827
        %v1853 = vsub.f32 %v1596, %v1828
        %v1854 = vsub.f32 %v1602, %v1829
        %v1855 = vsub.f32 %v1608, %v1830
        %v1856 = vsub.f32 %v1614, %v1831
        %v1857 = vsub.f32 %v1620, %v1832
        %v1858 = vsub.f32 %v1626, %v1833
        %v1859 = vsub.f32 %v1632, %v1834
        %v1860 = vsub.f32 %v1638, %v1835
        %v1861 = vsub.f32 %v1644, %v1836
        %v1862 = vsub.f32 %v1650, %v1837
        %v1863 = vsub.f32 %v1656, %v1838
        %v1864 = vsub.f32 %v1662, %v1839
        %v1865 = vsub.f32 %v1668, %v1840
        %v1866 = vsub.f32 %v1674, %v1841
        %v1867 = vsub.f32 %v1680, %v1842
        %v1868 = vsub.f32 %v1686, %v1843
        %v1869 = vsub.f32 %v1692, %v1844
        %v1870 = vsub.f32 %v1698, %v1845
        %v1871 = vsub.f32 %v1704, %v1846
        %v1872 = vsub.f32 %v1710, %v1847
        %v1873 = vsub.f32 %v1716, %v1848
        %v1874 = vsub.f32 %v1722, %v1849
        %v1875 = vmul.f32 %v1775, -4.371139e-08
        %v1876 = vmul.f32 %v1776, -4.371139e-08
        %v1877 = vmul.f32 %v1777, -4.371139e-08
        %v1878 = vmul.f32 %v1778, -4.371139e-08
        %v1879 = vmul.f32 %v1779, -4.371139e-08
        %v1880 = vmul.f32 %v1780, -4.371139e-08
        %v1881 = vmul.f32 %v1781, -4.371139e-08
        %v1882 = vmul.f32 %v1782, -4.371139e-08
        %v1883 = vmul.f32 %v1783, -4.371139e-08
        %v1884 = vmul.f32 %v1784, -4.371139e-08
        %v1885 = vmul.f32 %v1785, -4.371139e-08
        %v1886 = vmul.f32 %v1786, -4.371139e-08
        %v1887 = vmul.f32 %v1787, -4.371139e-08
        %v1888 = vmul.f32 %v1788, -4.371139e-08
        %v1889 = vmul.f32 %v1789, -4.371139e-08
        %v1890 = vmul.f32 %v1790, -4.371139e-08
        %v1891 = vmul.f32 %v1791, -4.371139e-08
        %v1892 = vmul.f32 %v1792, -4.371139e-08
        %v1893 = vmul.f32 %v1793, -4.371139e-08
        %v1894 = vmul.f32 %v1794, -4.371139e-08
        %v1895 = vmul.f32 %v1795, -4.371139e-08
        %v1896 = vmul.f32 %v1796, -4.371139e-08
        %v1897 = vmul.f32 %v1797, -4.371139e-08
        %v1898 = vmul.f32 %v1798, -4.371139e-08
        %v1899 = vmul.f32 %v1799, -4.371139e-08
        %v1900 = vsub.f32 %v1850, %v1875
        %v1901 = vsub.f32 %v1851, %v1876
        %v1902 = vsub.f32 %v1852, %v1877
        %v1903 = vsub.f32 %v1853, %v1878
        %v1904 = vsub.f32 %v1854, %v1879
        %v1905 = vsub.f32 %v1855, %v1880
        %v1906 = vsub.f32 %v1856, %v1881
        %v1907 = vsub.f32 %v1857, %v1882
        %v1908 = vsub.f32 %v1858, %v1883
        %v1909 = vsub.f32 %v1859, %v1884
        %v1910 = vsub.f32 %v1860, %v1885
        %v1911 = vsub.f32 %v1861, %v1886
        %v1912 = vsub.f32 %v1862, %v1887
        %v1913 = vsub.f32 %v1863, %v1888
        %v1914 = vsub.f32 %v1864, %v1889
        %v1915 = vsub.f32 %v1865, %v1890
        %v1916 = vsub.f32 %v1866, %v1891
        %v1917 = vsub.f32 %v1867, %v1892
        %v1918 = vsub.f32 %v1868, %v1893
        %v1919 = vsub.f32 %v1869, %v1894
        %v1920 = vsub.f32 %v1870, %v1895
        %v1921 = vsub.f32 %v1871, %v1896
        %v1922 = vsub.f32 %v1872, %v1897
        %v1923 = vsub.f32 %v1873, %v1898
        %v1924 = vsub.f32 %v1874, %v1899
        %v1925 = vmul.f32 %v1900, %v1900
        %v1926 = vmul.f32 %v1901, %v1901
        %v1927 = vmul.f32 %v1902, %v1902
        %v1928 = vmul.f32 %v1903, %v1903
        %v1929 = vmul.f32 %v1904, %v1904
        %v1930 = vmul.f32 %v1905, %v1905
        %v1931 = vmul.f32 %v1906, %v1906
        %v1932 = vmul.f32 %v1907, %v1907
        %v1933 = vmul.f32 %v1908, %v1908
        %v1934 = vmul.f32 %v1909, %v1909
        %v1935 = vmul.f32 %v1910, %v1910
        %v1936 = vmul.f32 %v1911, %v1911
        %v1937 = vmul.f32 %v1912, %v1912
        %v1938 = vmul.f32 %v1913, %v1913
        %v1939 = vmul.f32 %v1914, %v1914
        %v1940 = vmul.f32 %v1915, %v1915
        %v1941 = vmul.f32 %v1916, %v1916
        %v1942 = vmul.f32 %v1917, %v1917
        %v1943 = vmul.f32 %v1918, %v1918
        %v1944 = vmul.f32 %v1919, %v1919
        %v1945 = vmul.f32 %v1920, %v1920
        %v1946 = vmul.f32 %v1921, %v1921
        %v1947 = vmul.f32 %v1922, %v1922
        %v1948 = vmul.f32 %v1923, %v1923
        %v1949 = vmul.f32 %v1924, %v1924
        %v1950 = vmul.f32 %v1925, 2.7557319e-06
        %v1951 = vmul.f32 %v1926, 2.7557319e-06
        %v1952 = vmul.f32 %v1927, 2.7557319e-06
        %v1953 = vmul.f32 %v1928, 2.7557319e-06
        %v1954 = vmul.f32 %v1929, 2.7557319e-06
        %v1955 = vmul.f32 %v1930, 2.7557319e-06
        %v1956 = vmul.f32 %v1931, 2.7557319e-06
        %v1957 = vmul.f32 %v1932, 2.7557319e-06
        %v1958 = vmul.f32 %v1933, 2.7557319e-06
        %v1959 = vmul.f32 %v1934, 2.7557319e-06
        %v1960 = vmul.f32 %v1935, 2.7557319e-06
        %v1961 = vmul.f32 %v1936, 2.7557319e-06
        %v1962 = vmul.f32 %v1937, 2.7557319e-06
        %v1963 = vmul.f32 %v1938, 2.7557319e-06
        %v1964 = vmul.f32 %v1939, 2.7557319e-06
        %v1965 = vmul.f32 %v1940, 2.7557319e-06
        %v1966 = vmul.f32 %v1941, 2.7557319e-06
        %v1967 = vmul.f32 %v1942, 2.7557319e-06
        %v1968 = vmul.f32 %v1943, 2.7557319e-06
        %v1969 = vmul.f32 %v1944, 2.7557319e-06
        %v1970 = vmul.f32 %v1945, 2.7557319e-06
        %v1971 = vmul.f32 %v1946, 2.7557319e-06
        %v1972 = vmul.f32 %v1947, 2.7557319e-06
        %v1973 = vmul.f32 %v1948, 2.7557319e-06
        %v1974 = vmul.f32 %v1949, 2.7557319e-06
        %v1975 = vadd.f32 %v1950, -0.0001984127
        %v1976 = vadd.f32 %v1951, -0.0001984127
        %v1977 = vadd.f32 %v1952, -0.0001984127
        %v1978 = vadd.f32 %v1953, -0.0001984127
        %v1979 = vadd.f32 %v1954, -0.0001984127
        %v1980 = vadd.f32 %v1955, -0.0001984127
        %v1981 = vadd.f32 %v1956, -0.0001984127
        %v1982 = vadd.f32 %v1957, -0.0001984127
        %v1983 = vadd.f32 %v1958, -0.0001984127
        %v1984 = vadd.f32 %v1959, -0.0001984127
        %v1985 = vadd.f32 %v1960, -0.0001984127
        %v1986 = vadd.f32 %v1961, -0.0001984127
        %v1987 = vadd.f32 %v1962, -0.0001984127
        %v1988 = vadd.f32 %v1963, -0.0001984127
        %v1989 = vadd.f32 %v1964, -0.0001984127
        %v1990 = vadd.f32 %v1965, -0.0001984127
        %v1991 = vadd.f32 %v1966, -0.0001984127
        %v1992 = vadd.f32 %v1967, -0.0001984127
        %v1993 = vadd.f32 %v1968, -0.0001984127
        %v1994 = vadd.f32 %v1969, -0.0001984127
        %v1995 = vadd.f32 %v1970, -0.0001984127
        %v1996 = vadd.f32 %v1971, -0.0001984127
        %v1997 = vadd.f32 %v1972, -0.0001984127
        %v1998 = vadd.f32 %v1973, -0.0001984127
        %v1999 = vadd.f32 %v1974, -0.0001984127
        %v2000 = vmul.f32 %v1925, %v1975
        %v2001 = vmul.f32 %v1926, %v1976
        %v2002 = vmul.f32 %v1927, %v1977
        %v2003 = vmul.f32 %v1928, %v1978
        %v2004 = vmul.f32 %v1929, %v1979
        %v2005 = vmul.f32 %v1930, %v1980
        %v2006 = vmul.f32 %v1931, %v1981
        %v2007 = vmul.f32 %v1932, %v1982
        %v2008 = vmul.f32 %v1933, %v1983
        %v2009 = vmul.f32 %v1934, %v1984
        %v2010 = vmul.f32 %v1935, %v1985
        %v2011 = vmul.f32 %v1936, %v1986
        %v2012 = vmul.f32 %v1937, %v1987
        %v2013 = vmul.f32 %v1938, %v1988
        %v2014 = vmul.f32 %v1939, %v1989
        %v2015 = vmul.f32 %v1940, %v1990
        %v2016 = vmul.f32 %v1941, %v1991
        %v2017 = vmul.f32 %v1942, %v1992
        %v2018 = vmul.f32 %v1943, %v1993
        %v2019 = vmul.f32 %v1944, %v1994
        %v2020 = vmul.f32 %v1945, %v1995
        %v2021 = vmul.f32 %v1946, %v1996
        %v2022 = vmul.f32 %v1947, %v1997
        %v2023 = vmul.f32 %v1948, %v1998
        %v2024 = vmul.f32 %v1949, %v1999
        %v2025 = vadd.f32 %v2000, 0.008333334
        %v2026 = vadd.f32 %v2001, 0.008333334
        %v2027 = vadd.f32 %v2002, 0.008333334
        %v2028 = vadd.f32 %v2003, 0.008333334
        %v2029 = vadd.f32 %v2004, 0.008333334
        %v2030 = vadd.f32 %v2005, 0.008333334
        %v2031 = vadd.f32 %v2006, 0.008333334
        %v2032 = vadd.f32 %v2007, 0.008333334
        %v2033 = vadd.f32 %v2008, 0.008333334
        %v2034 = vadd.f32 %v2009, 0.008333334
        %v2035 = vadd.f32 %v2010, 0.008333334
        %v2036 = vadd.f32 %v2011, 0.008333334
        %v2037 = vadd.f32 %v2012, 0.008333334
        %v2038 = vadd.f32 %v2013, 0.008333334
        %v2039 = vadd.f32 %v2014, 0.008333334
        %v2040 = vadd.f32 %v2015, 0.008333334
        %v2041 = vadd.f32 %v2016, 0.008333334
        %v2042 = vadd.f32 %v2017, 0.008333334
        %v2043 = vadd.f32 %v2018, 0.008333334
        %v2044 = vadd.f32 %v2019, 0.008333334
        %v2045 = vadd.f32 %v2020, 0.008333334
        %v2046 = vadd.f32 %v2021, 0.008333334
        %v2047 = vadd.f32 %v2022, 0.008333334
        %v2048 = vadd.f32 %v2023, 0.008333334
        %v2049 = vadd.f32 %v2024, 0.008333334
        %v2050 = vmul.f32 %v1925, %v2025
        %v2051 = vmul.f32 %v1926, %v2026
        %v2052 = vmul.f32 %v1927, %v2027
        %v2053 = vmul.f32 %v1928, %v2028
        %v2054 = vmul.f32 %v1929, %v2029
        %v2055 = vmul.f32 %v1930, %v2030
        %v2056 = vmul.f32 %v1931, %v2031
        %v2057 = vmul.f32 %v1932, %v2032
        %v2058 = vmul.f32 %v1933, %v2033
        %v2059 = vmul.f32 %v1934, %v2034
        %v2060 = vmul.f32 %v1935, %v2035
        %v2061 = vmul.f32 %v1936, %v2036
        %v2062 = vmul.f32 %v1937, %v2037
        %v2063 = vmul.f32 %v1938, %v2038
        %v2064 = vmul.f32 %v1939, %v2039
        %v2065 = vmul.f32 %v1940, %v2040
        %v2066 = vmul.f32 %v1941, %v2041
        %v2067 = vmul.f32 %v1942, %v2042
        %v2068 = vmul.f32 %v1943, %v2043
        %v2069 = vmul.f32 %v1944, %v2044
        %v2070 = vmul.f32 %v1945, %v2045
        %v2071 = vmul.f32 %v1946, %v2046
        %v2072 = vmul.f32 %v1947, %v2047
        %v2073 = vmul.f32 %v1948, %v2048
        %v2074 = vmul.f32 %v1949, %v2049
        %v2075 = vadd.f32 %v2050, -0.16666667
        %v2076 = vadd.f32 %v2051, -0.16666667
        %v2077 = vadd.f32 %v2052, -0.16666667
        %v2078 = vadd.f32 %v2053, -0.16666667
        %v2079 = vadd.f32 %v2054, -0.16666667
        %v2080 = vadd.f32 %v2055, -0.16666667
        %v2081 = vadd.f32 %v2056, -0.16666667
        %v2082 = vadd.f32 %v2057, -0.16666667
        %v2083 = vadd.f32 %v2058, -0.16666667
        %v2084 = vadd.f32 %v2059, -0.16666667
        %v2085 = vadd.f32 %v2060, -0.16666667
        %v2086 = vadd.f32 %v2061, -0.16666667
        %v2087 = vadd.f32 %v2062, -0.16666667
        %v2088 = vadd.f32 %v2063, -0.16666667
        %v2089 = vadd.f32 %v2064, -0.16666667
        %v2090 = vadd.f32 %v2065, -0.16666667
        %v2091 = vadd.f32 %v2066, -0.16666667
        %v2092 = vadd.f32 %v2067, -0.16666667
        %v2093 = vadd.f32 %v2068, -0.16666667
        %v2094 = vadd.f32 %v2069, -0.16666667
        %v2095 = vadd.f32 %v2070, -0.16666667
        %v2096 = vadd.f32 %v2071, -0.16666667
        %v2097 = vadd.f32 %v2072, -0.16666667
        %v2098 = vadd.f32 %v2073, -0.16666667
        %v2099 = vadd.f32 %v2074, -0.16666667
        %v2100 = vmul.f32 %v1925, %v2075
        %v2101 = vmul.f32 %v1926, %v2076
        %v2102 = vmul.f32 %v1927, %v2077
        %v2103 = vmul.f32 %v1928, %v2078
        %v2104 = vmul.f32 %v1929, %v2079
        %v2105 = vmul.f32 %v1930, %v2080
        %v2106 = vmul.f32 %v1931, %v2081
        %v2107 = vmul.f32 %v1932, %v2082
        %v2108 = vmul.f32 %v1933, %v2083
        %v2109 = vmul.f32 %v1934, %v2084
        %v2110 = vmul.f32 %v1935, %v2085
        %v2111 = vmul.f32 %v1936, %v2086
        %v2112 = vmul.f32 %v1937, %v2087
        %v2113 = vmul.f32 %v1938, %v2088
        %v2114 = vmul.f32 %v1939, %v2089
        %v2115 = vmul.f32 %v1940, %v2090
        %v2116 = vmul.f32 %v1941, %v2091
        %v2117 = vmul.f32 %v1942, %v2092
        %v2118 = vmul.f32 %v1943, %v2093
        %v2119 = vmul.f32 %v1944, %v2094
        %v2120 = vmul.f32 %v1945, %v2095
        %v2121 = vmul.f32 %v1946, %v2096
        %v2122 = vmul.f32 %v1947, %v2097
        %v2123 = vmul.f32 %v1948, %v2098
        %v2124 = vmul.f32 %v1949, %v2099
        %v2125 = vadd.f32 %v2100, 1.0
        %v2126 = vadd.f32 %v2101, 1.0
        %v2127 = vadd.f32 %v2102, 1.0
        %v2128 = vadd.f32 %v2103, 1.0
        %v2129 = vadd.f32 %v2104, 1.0
        %v2130 = vadd.f32 %v2105, 1.0
        %v2131 = vadd.f32 %v2106, 1.0
        %v2132 = vadd.f32 %v2107, 1.0
        %v2133 = vadd.f32 %v2108, 1.0
        %v2134 = vadd.f32 %v2109, 1.0
        %v2135 = vadd.f32 %v2110, 1.0
        %v2136 = vadd.f32 %v2111, 1.0
        %v2137 = vadd.f32 %v2112, 1.0
        %v2138 = vadd.f32 %v2113, 1.0
        %v2139 = vadd.f32 %v2114, 1.0
        %v2140 = vadd.f32 %v2115, 1.0
        %v2141 = vadd.f32 %v2116, 1.0
        %v2142 = vadd.f32 %v2117, 1.0
        %v2143 = vadd.f32 %v2118, 1.0
        %v2144 = vadd.f32 %v2119, 1.0
        %v2145 = vadd.f32 %v2120, 1.0
        %v2146 = vadd.f32 %v2121, 1.0
        %v2147 = vadd.f32 %v2122, 1.0
        %v2148 = vadd.f32 %v2123, 1.0
        %v2149 = vadd.f32 %v2124, 1.0
        %v2150 = vmul.f32 %v1900, %v2125
        %v2151 = vmul.f32 %v1901, %v2126
        %v2152 = vmul.f32 %v1902, %v2127
        %v2153 = vmul.f32 %v1903, %v2128
        %v2154 = vmul.f32 %v1904, %v2129
        %v2155 = vmul.f32 %v1905, %v2130
        %v2156 = vmul.f32 %v1906, %v2131
        %v2157 = vmul.f32 %v1907, %v2132
        %v2158 = vmul.f32 %v1908, %v2133
        %v2159 = vmul.f32 %v1909, %v2134
        %v2160 = vmul.f32 %v1910, %v2135
        %v2161 = vmul.f32 %v1911, %v2136
        %v2162 = vmul.f32 %v1912, %v2137
        %v2163 = vmul.f32 %v1913, %v2138
        %v2164 = vmul.f32 %v1914, %v2139
        %v2165 = vmul.f32 %v1915, %v2140
        %v2166 = vmul.f32 %v1916, %v2141
        %v2167 = vmul.f32 %v1917, %v2142
        %v2168 = vmul.f32 %v1918, %v2143
        %v2169 = vmul.f32 %v1919, %v2144
        %v2170 = vmul.f32 %v1920, %v2145
        %v2171 = vmul.f32 %v1921, %v2146
        %v2172 = vmul.f32 %v1922, %v2147
        %v2173 = vmul.f32 %v1923, %v2148
        %v2174 = vmul.f32 %v1924, %v2149
        %v2175 = vmul.f32 %v1925, 2.4801588e-05
        %v2176 = vmul.f32 %v1926, 2.4801588e-05
        %v2177 = vmul.f32 %v1927, 2.4801588e-05
        %v2178 = vmul.f32 %v1928, 2.4801588e-05
        %v2179 = vmul.f32 %v1929, 2.4801588e-05
        %v2180 = vmul.f32 %v1930, 2.4801588e-05
        %v2181 = vmul.f32 %v1931, 2.4801588e-05
        %v2182 = vmul.f32 %v1932, 2.4801588e-05
        %v2183 = vmul.f32 %v1933, 2.4801588e-05
        %v2184 = vmul.f32 %v1934, 2.4801588e-05
        %v2185 = vmul.f32 %v1935, 2.4801588e-05
        %v2186 = vmul.f32 %v1936, 2.4801588e-05
        %v2187 = vmul.f32 %v1937, 2.4801588e-05
        %v2188 = vmul.f32 %v1938, 2.4801588e-05
        %v2189 = vmul.f32 %v1939, 2.4801588e-05
        %v2190 = vmul.f32 %v1940, 2.4801588e-05
        %v2191 = vmul.f32 %v1941, 2.4801588e-05
        %v2192 = vmul.f32 %v1942, 2.4801588e-05
        %v2193 = vmul.f32 %v1943, 2.4801588e-05
        %v2194 = vmul.f32 %v1944, 2.4801588e-05
        %v2195 = vmul.f32 %v1945, 2.4801588e-05
        %v2196 = vmul.f32 %v1946, 2.4801588e-05
        %v2197 = vmul.f32 %v1947, 2.4801588e-05
        %v2198 = vmul.f32 %v1948, 2.4801588e-05
        %v2199 = vmul.f32 %v1949, 2.4801588e-05
        %v2200 = vadd.f32 %v2175, -0.0013888889
        %v2201 = vadd.f32 %v2176, -0.0013888889
        %v2202 = vadd.f32 %v2177, -0.0013888889
        %v2203 = vadd.f32 %v2178, -0.0013888889
        %v2204 = vadd.f32 %v2179, -0.0013888889
        %v2205 = vadd.f32 %v2180, -0.0013888889
        %v2206 = vadd.f32 %v2181, -0.0013888889
        %v2207 = vadd.f32 %v2182, -0.0013888889
        %v2208 = vadd.f32 %v2183, -0.0013888889
        %v2209 = vadd.f32 %v2184, -0.0013888889
        %v2210 = vadd.f32 %v2185, -0.0013888889
        %v2211 = vadd.f32 %v2186, -0.0013888889
        %v2212 = vadd.f32 %v2187, -0.0013888889
        %v2213 = vadd.f32 %v2188, -0.0013888889
        %v2214 = vadd.f32 %v2189, -0.0013888889
        %v2215 = vadd.f32 %v2190, -0.0013888889
        %v2216 = vadd.f32 %v2191, -0.0013888889
        %v2217 = vadd.f32 %v2192, -0.0013888889
        %v2218 = vadd.f32 %v2193, -0.0013888889
        %v2219 = vadd.f32 %v2194, -0.0013888889
        %v2220 = vadd.f32 %v2195, -0.0013888889
        %v2221 = vadd.f32 %v2196, -0.0013888889
        %v2222 = vadd.f32 %v2197, -0.0013888889
        %v2223 = vadd.f32 %v2198, -0.0013888889
        %v2224 = vadd.f32 %v2199, -0.0013888889
        %v2225 = vmul.f32 %v1925, %v2200
        %v2226 = vmul.f32 %v1926, %v2201
        %v2227 = vmul.f32 %v1927, %v2202
        %v2228 = vmul.f32 %v1928, %v2203
        %v2229 = vmul.f32 %v1929, %v2204
        %v2230 = vmul.f32 %v1930, %v2205
        %v2231 = vmul.f32 %v1931, %v2206
        %v2232 = vmul.f32 %v1932, %v2207
        %v2233 = vmul.f32 %v1933, %v2208
        %v2234 = vmul.f32 %v1934, %v2209
        %v2235 = vmul.f32 %v1935, %v2210
        %v2236 = vmul.f32 %v1936, %v2211
        %v2237 = vmul.f32 %v1937, %v2212
        %v2238 = vmul.f32 %v1938, %v2213
        %v2239 = vmul.f32 %v1939, %v2214
        %v2240 = vmul.f32 %v1940, %v2215
        %v2241 = vmul.f32 %v1941, %v2216
        %v2242 = vmul.f32 %v1942, %v2217
        %v2243 = vmul.f32 %v1943, %v2218
        %v2244 = vmul.f32 %v1944, %v2219
        %v2245 = vmul.f32 %v1945, %v2220
        %v2246 = vmul.f32 %v1946, %v2221
        %v2247 = vmul.f32 %v1947, %v2222
        %v2248 = vmul.f32 %v1948, %v2223
        %v2249 = vmul.f32 %v1949, %v2224
        %v2250 = vadd.f32 %v2225, 0.041666668
        %v2251 = vadd.f32 %v2226, 0.041666668
        %v2252 = vadd.f32 %v2227, 0.041666668
        %v2253 = vadd.f32 %v2228, 0.041666668
        %v2254 = vadd.f32 %v2229, 0.041666668
        %v2255 = vadd.f32 %v2230, 0.041666668
        %v2256 = vadd.f32 %v2231, 0.041666668
        %v2257 = vadd.f32 %v2232, 0.041666668
        %v2258 = vadd.f32 %v2233, 0.041666668
        %v2259 = vadd.f32 %v2234, 0.041666668
        %v2260 = vadd.f32 %v2235, 0.041666668
        %v2261 = vadd.f32 %v2236, 0.041666668
        %v2262 = vadd.f32 %v2237, 0.041666668
        %v2263 = vadd.f32 %v2238, 0.041666668
        %v2264 = vadd.f32 %v2239, 0.041666668
        %v2265 = vadd.f32 %v2240, 0.041666668
        %v2266 = vadd.f32 %v2241, 0.041666668
        %v2267 = vadd.f32 %v2242, 0.041666668
        %v2268 = vadd.f32 %v2243, 0.041666668
        %v2269 = vadd.f32 %v2244, 0.041666668
        %v2270 = vadd.f32 %v2245, 0.041666668
        %v2271 = vadd.f32 %v2246, 0.041666668
        %v2272 = vadd.f32 %v2247, 0.041666668
        %v2273 = vadd.f32 %v2248, 0.041666668
        %v2274 = vadd.f32 %v2249, 0.041666668
        %v2275 = vmul.f32 %v1925, %v2250
        %v2276 = vmul.f32 %v1926, %v2251
        %v2277 = vmul.f32 %v1927, %v2252
        %v2278 = vmul.f32 %v1928, %v2253
        %v2279 = vmul.f32 %v1929, %v2254
        %v2280 = vmul.f32 %v1930, %v2255
        %v2281 = vmul.f32 %v1931, %v2256
        %v2282 = vmul.f32 %v1932, %v2257
        %v2283 = vmul.f32 %v1933, %v2258
        %v2284 = vmul.f32 %v1934, %v2259
        %v2285 = vmul.f32 %v1935, %v2260
        %v2286 = vmul.f32 %v1936, %v2261
        %v2287 = vmul.f32 %v1937, %v2262
        %v2288 = vmul.f32 %v1938, %v2263
        %v2289 = vmul.f32 %v1939, %v2264
        %v2290 = vmul.f32 %v1940, %v2265
        %v2291 = vmul.f32 %v1941, %v2266
        %v2292 = vmul.f32 %v1942, %v2267
        %v2293 = vmul.f32 %v1943, %v2268
        %v2294 = vmul.f32 %v1944, %v2269
        %v2295 = vmul.f32 %v1945, %v2270
        %v2296 = vmul.f32 %v1946, %v2271
        %v2297 = vmul.f32 %v1947, %v2272
        %v2298 = vmul.f32 %v1948, %v2273
        %v2299 = vmul.f32 %v1949, %v2274
        %v2300 = vadd.f32 %v2275, -0.5
        %v2301 = vadd.f32 %v2276, -0.5
        %v2302 = vadd.f32 %v2277, -0.5
        %v2303 = vadd.f32 %v2278, -0.5
        %v2304 = vadd.f32 %v2279, -0.5
        %v2305 = vadd.f32 %v2280, -0.5
        %v2306 = vadd.f32 %v2281, -0.5
        %v2307 = vadd.f32 %v2282, -0.5
        %v2308 = vadd.f32 %v2283, -0.5
        %v2309 = vadd.f32 %v2284, -0.5
        %v2310 = vadd.f32 %v2285, -0.5
        %v2311 = vadd.f32 %v2286, -0.5
        %v2312 = vadd.f32 %v2287, -0.5
        %v2313 = vadd.f32 %v2288, -0.5
        %v2314 = vadd.f32 %v2289, -0.5
        %v2315 = vadd.f32 %v2290, -0.5
        %v2316 = vadd.f32 %v2291, -0.5
        %v2317 = vadd.f32 %v2292, -0.5
        %v2318 = vadd.f32 %v2293, -0.5
        %v2319 = vadd.f32 %v2294, -0.5
        %v2320 = vadd.f32 %v2295, -0.5
        %v2321 = vadd.f32 %v2296, -0.5
        %v2322 = vadd.f32 %v2297, -0.5
        %v2323 = vadd.f32 %v2298, -0.5
        %v2324 = vadd.f32 %v2299, -0.5
        %v2325 = vmul.f32 %v1925, %v2300
        %v2326 = vmul.f32 %v1926, %v2301
        %v2327 = vmul.f32 %v1927, %v2302
        %v2328 = vmul.f32 %v1928, %v2303
        %v2329 = vmul.f32 %v1929, %v2304
        %v2330 = vmul.f32 %v1930, %v2305
        %v2331 = vmul.f32 %v1931, %v2306
        %v2332 = vmul.f32 %v1932, %v2307
        %v2333 = vmul.f32 %v1933, %v2308
        %v2334 = vmul.f32 %v1934, %v2309
        %v2335 = vmul.f32 %v1935, %v2310
        %v2336 = vmul.f32 %v1936, %v2311
        %v2337 = vmul.f32 %v1937, %v2312
        %v2338 = vmul.f32 %v1938, %v2313
        %v2339 = vmul.f32 %v1939, %v2314
        %v2340 = vmul.f32 %v1940, %v2315
        %v2341 = vmul.f32 %v1941, %v2316
        %v2342 = vmul.f32 %v1942, %v2317
        %v2343 = vmul.f32 %v1943, %v2318
        %v2344 = vmul.f32 %v1944, %v2319
        %v2345 = vmul.f32 %v1945, %v2320
        %v2346 = vmul.f32 %v1946, %v2321
        %v2347 = vmul.f32 %v1947, %v2322
        %v2348 = vmul.f32 %v1948, %v2323
        %v2349 = vmul.f32 %v1949, %v2324
        %v2350 = vadd.f32 %v2325, 1.0
        %v2351 = vadd.f32 %v2326, 1.0
        %v2352 = vadd.f32 %v2327, 1.0
        %v2353 = vadd.f32 %v2328, 1.0
        %v2354 = vadd.f32 %v2329, 1.0
        %v2355 = vadd.f32 %v2330, 1.0
        %v2356 = vadd.f32 %v2331, 1.0
        %v2357 = vadd.f32 %v2332, 1.0
        %v2358 = vadd.f32 %v2333, 1.0
        %v2359 = vadd.f32 %v2334, 1.0
        %v2360 = vadd.f32 %v2335, 1.0
        %v2361 = vadd.f32 %v2336, 1.0
        %v2362 = vadd.f32 %v2337, 1.0
        %v2363 = vadd.f32 %v2338, 1.0
        %v2364 = vadd.f32 %v2339, 1.0
        %v2365 = vadd.f32 %v2340, 1.0
        %v2366 = vadd.f32 %v2341, 1.0
        %v2367 = vadd.f32 %v2342, 1.0
        %v2368 = vadd.f32 %v2343, 1.0
        %v2369 = vadd.f32 %v2344, 1.0
        %v2370 = vadd.f32 %v2345, 1.0
        %v2371 = vadd.f32 %v2346, 1.0
        %v2372 = vadd.f32 %v2347, 1.0
        %v2373 = vadd.f32 %v2348, 1.0
        %v2374 = vadd.f32 %v2349, 1.0
        %v2375 = vand.u32 %v1800, 1
        %v2376 = vand.u32 %v1801, 1
        %v2377 = vand.u32 %v1802, 1
        %v2378 = vand.u32 %v1803, 1
        %v2379 = vand.u32 %v1804, 1
        %v2380 = vand.u32 %v1805, 1
        %v2381 = vand.u32 %v1806, 1
        %v2382 = vand.u32 %v1807, 1
        %v2383 = vand.u32 %v1808, 1
        %v2384 = vand.u32 %v1809, 1
        %v2385 = vand.u32 %v1810, 1
        %v2386 = vand.u32 %v1811, 1
        %v2387 = vand.u32 %v1812, 1
        %v2388 = vand.u32 %v1813, 1
        %v2389 = vand.u32 %v1814, 1
        %v2390 = vand.u32 %v1815, 1
        %v2391 = vand.u32 %v1816, 1
        %v2392 = vand.u32 %v1817, 1
        %v2393 = vand.u32 %v1818, 1
        %v2394 = vand.u32 %v1819, 1
        %v2395 = vand.u32 %v1820, 1
        %v2396 = vand.u32 %v1821, 1
        %v2397 = vand.u32 %v1822, 1
        %v2398 = vand.u32 %v1823, 1
        %v2399 = vand.u32 %v1824, 1
        %vm2400 = vcmp.ne.s32.totalorder %v2375, 0
        %vm2401 = vcmp.ne.s32.totalorder %v2376, 0
        %vm2402 = vcmp.ne.s32.totalorder %v2377, 0
        %vm2403 = vcmp.ne.s32.totalorder %v2378, 0
        %vm2404 = vcmp.ne.s32.totalorder %v2379, 0
        %vm2405 = vcmp.ne.s32.totalorder %v2380, 0
        %vm2406 = vcmp.ne.s32.totalorder %v2381, 0
        %vm2407 = vcmp.ne.s32.totalorder %v2382, 0
        %vm2408 = vcmp.ne.s32.totalorder %v2383, 0
        %vm2409 = vcmp.ne.s32.totalorder %v2384, 0
        %vm2410 = vcmp.ne.s32.totalorder %v2385, 0
        %vm2411 = vcmp.ne.s32.totalorder %v2386, 0
        %vm2412 = vcmp.ne.s32.totalorder %v2387, 0
        %vm2413 = vcmp.ne.s32.totalorder %v2388, 0
        %vm2414 = vcmp.ne.s32.totalorder %v2389, 0
        %vm2415 = vcmp.ne.s32.totalorder %v2390, 0
        %vm2416 = vcmp.ne.s32.totalorder %v2391, 0
        %vm2417 = vcmp.ne.s32.totalorder %v2392, 0
        %vm2418 = vcmp.ne.s32.totalorder %v2393, 0
        %vm2419 = vcmp.ne.s32.totalorder %v2394, 0
        %vm2420 = vcmp.ne.s32.totalorder %v2395, 0
        %vm2421 = vcmp.ne.s32.totalorder %v2396, 0
        %vm2422 = vcmp.ne.s32.totalorder %v2397, 0
        %vm2423 = vcmp.ne.s32.totalorder %v2398, 0
        %vm2424 = vcmp.ne.s32.totalorder %v2399, 0
        %v2425 = vsel %vm2400, %v2350, %v2150
        %v2426 = vsel %vm2401, %v2351, %v2151
        %v2427 = vsel %vm2402, %v2352, %v2152
        %v2428 = vsel %vm2403, %v2353, %v2153
        %v2429 = vsel %vm2404, %v2354, %v2154
        %v2430 = vsel %vm2405, %v2355, %v2155
        %v2431 = vsel %vm2406, %v2356, %v2156
        %v2432 = vsel %vm2407, %v2357, %v2157
        %v2433 = vsel %vm2408, %v2358, %v2158
        %v2434 = vsel %vm2409, %v2359, %v2159
        %v2435 = vsel %vm2410, %v2360, %v2160
        %v2436 = vsel %vm2411, %v2361, %v2161
        %v2437 = vsel %vm2412, %v2362, %v2162
        %v2438 = vsel %vm2413, %v2363, %v2163
        %v2439 = vsel %vm2414, %v2364, %v2164
        %v2440 = vsel %vm2415, %v2365, %v2165
        %v2441 = vsel %vm2416, %v2366, %v2166
        %v2442 = vsel %vm2417, %v2367, %v2167
        %v2443 = vsel %vm2418, %v2368, %v2168
        %v2444 = vsel %vm2419, %v2369, %v2169
        %v2445 = vsel %vm2420, %v2370, %v2170
        %v2446 = vsel %vm2421, %v2371, %v2171
        %v2447 = vsel %vm2422, %v2372, %v2172
        %v2448 = vsel %vm2423, %v2373, %v2173
        %v2449 = vsel %vm2424, %v2374, %v2174
        %v2450 = vsel %vm2400, %v2150, %v2350
        %v2451 = vsel %vm2401, %v2151, %v2351
        %v2452 = vsel %vm2402, %v2152, %v2352
        %v2453 = vsel %vm2403, %v2153, %v2353
        %v2454 = vsel %vm2404, %v2154, %v2354
        %v2455 = vsel %vm2405, %v2155, %v2355
        %v2456 = vsel %vm2406, %v2156, %v2356
        %v2457 = vsel %vm2407, %v2157, %v2357
        %v2458 = vsel %vm2408, %v2158, %v2358
        %v2459 = vsel %vm2409, %v2159, %v2359
        %v2460 = vsel %vm2410, %v2160, %v2360
        %v2461 = vsel %vm2411, %v2161, %v2361
        %v2462 = vsel %vm2412, %v2162, %v2362
        %v2463 = vsel %vm2413, %v2163, %v2363
        %v2464 = vsel %vm2414, %v2164, %v2364
        %v2465 = vsel %vm2415, %v2165, %v2365
        %v2466 = vsel %vm2416, %v2166, %v2366
        %v2467 = vsel %vm2417, %v2167, %v2367
        %v2468 = vsel %vm2418, %v2168, %v2368
        %v2469 = vsel %vm2419, %v2169, %v2369
        %v2470 = vsel %vm2420, %v2170, %v2370
        %v2471 = vsel %vm2421, %v2171, %v2371
        %v2472 = vsel %vm2422, %v2172, %v2372
        %v2473 = vsel %vm2423, %v2173, %v2373
        %v2474 = vsel %vm2424, %v2174, %v2374
        %v2475 = vand.u32 %v1800, 2
        %v2476 = vand.u32 %v1801, 2
        %v2477 = vand.u32 %v1802, 2
        %v2478 = vand.u32 %v1803, 2
        %v2479 = vand.u32 %v1804, 2
        %v2480 = vand.u32 %v1805, 2
        %v2481 = vand.u32 %v1806, 2
        %v2482 = vand.u32 %v1807, 2
        %v2483 = vand.u32 %v1808, 2
        %v2484 = vand.u32 %v1809, 2
        %v2485 = vand.u32 %v1810, 2
        %v2486 = vand.u32 %v1811, 2
        %v2487 = vand.u32 %v1812, 2
        %v2488 = vand.u32 %v1813, 2
        %v2489 = vand.u32 %v1814, 2
        %v2490 = vand.u32 %v1815, 2
        %v2491 = vand.u32 %v1816, 2
        %v2492 = vand.u32 %v1817, 2
        %v2493 = vand.u32 %v1818, 2
        %v2494 = vand.u32 %v1819, 2
        %v2495 = vand.u32 %v1820, 2
        %v2496 = vand.u32 %v1821, 2
        %v2497 = vand.u32 %v1822, 2
        %v2498 = vand.u32 %v1823, 2
        %v2499 = vand.u32 %v1824, 2
        %vm2500 = vcmp.ne.s32.totalorder %v2475, 0
        %vm2501 = vcmp.ne.s32.totalorder %v2476, 0
        %vm2502 = vcmp.ne.s32.totalorder %v2477, 0
        %vm2503 = vcmp.ne.s32.totalorder %v2478, 0
        %vm2504 = vcmp.ne.s32.totalorder %v2479, 0
        %vm2505 = vcmp.ne.s32.totalorder %v2480, 0
        %vm2506 = vcmp.ne.s32.totalorder %v2481, 0
        %vm2507 = vcmp.ne.s32.totalorder %v2482, 0
        %vm2508 = vcmp.ne.s32.totalorder %v2483, 0
        %vm2509 = vcmp.ne.s32.totalorder %v2484, 0
        %vm2510 = vcmp.ne.s32.totalorder %v2485, 0
        %vm2511 = vcmp.ne.s32.totalorder %v2486, 0
        %vm2512 = vcmp.ne.s32.totalorder %v2487, 0
        %vm2513 = vcmp.ne.s32.totalorder %v2488, 0
        %vm2514 = vcmp.ne.s32.totalorder %v2489, 0
        %vm2515 = vcmp.ne.s32.totalorder %v2490, 0
        %vm2516 = vcmp.ne.s32.totalorder %v2491, 0
        %vm2517 = vcmp.ne.s32.totalorder %v2492, 0
        %vm2518 = vcmp.ne.s32.totalorder %v2493, 0
        %vm2519 = vcmp.ne.s32.totalorder %v2494, 0
        %vm2520 = vcmp.ne.s32.totalorder %v2495, 0
        %vm2521 = vcmp.ne.s32.totalorder %v2496, 0
        %vm2522 = vcmp.ne.s32.totalorder %v2497, 0
        %vm2523 = vcmp.ne.s32.totalorder %v2498, 0
        %vm2524 = vcmp.ne.s32.totalorder %v2499, 0
        %v2525 = vsub.f32 0.0, %v2425
        %v2526 = vsub.f32 0.0, %v2426
        %v2527 = vsub.f32 0.0, %v2427
        %v2528 = vsub.f32 0.0, %v2428
        %v2529 = vsub.f32 0.0, %v2429
        %v2530 = vsub.f32 0.0, %v2430
        %v2531 = vsub.f32 0.0, %v2431
        %v2532 = vsub.f32 0.0, %v2432
        %v2533 = vsub.f32 0.0, %v2433
        %v2534 = vsub.f32 0.0, %v2434
        %v2535 = vsub.f32 0.0, %v2435
        %v2536 = vsub.f32 0.0, %v2436
        %v2537 = vsub.f32 0.0, %v2437
        %v2538 = vsub.f32 0.0, %v2438
        %v2539 = vsub.f32 0.0, %v2439
        %v2540 = vsub.f32 0.0, %v2440
        %v2541 = vsub.f32 0.0, %v2441
        %v2542 = vsub.f32 0.0, %v2442
        %v2543 = vsub.f32 0.0, %v2443
        %v2544 = vsub.f32 0.0, %v2444
        %v2545 = vsub.f32 0.0, %v2445
        %v2546 = vsub.f32 0.0, %v2446
        %v2547 = vsub.f32 0.0, %v2447
        %v2548 = vsub.f32 0.0, %v2448
        %v2549 = vsub.f32 0.0, %v2449
        %v2550 = vsel %vm2500, %v2525, %v2425
        %v2551 = vsel %vm2501, %v2526, %v2426
        %v2552 = vsel %vm2502, %v2527, %v2427
        %v2553 = vsel %vm2503, %v2528, %v2428
        %v2554 = vsel %vm2504, %v2529, %v2429
        %v2555 = vsel %vm2505, %v2530, %v2430
        %v2556 = vsel %vm2506, %v2531, %v2431
        %v2557 = vsel %vm2507, %v2532, %v2432
        %v2558 = vsel %vm2508, %v2533, %v2433
        %v2559 = vsel %vm2509, %v2534, %v2434
        %v2560 = vsel %vm2510, %v2535, %v2435
        %v2561 = vsel %vm2511, %v2536, %v2436
        %v2562 = vsel %vm2512, %v2537, %v2437
        %v2563 = vsel %vm2513, %v2538, %v2438
        %v2564 = vsel %vm2514, %v2539, %v2439
        %v2565 = vsel %vm2515, %v2540, %v2440
        %v2566 = vsel %vm2516, %v2541, %v2441
        %v2567 = vsel %vm2517, %v2542, %v2442
        %v2568 = vsel %vm2518, %v2543, %v2443
        %v2569 = vsel %vm2519, %v2544, %v2444
        %v2570 = vsel %vm2520, %v2545, %v2445
        %v2571 = vsel %vm2521, %v2546, %v2446
        %v2572 = vsel %vm2522, %v2547, %v2447
        %v2573 = vsel %vm2523, %v2548, %v2448
        %v2574 = vsel %vm2524, %v2549, %v2449
        %v2575 = vadd.s32 %v1800, 1
        %v2576 = vadd.s32 %v1801, 1
        %v2577 = vadd.s32 %v1802, 1
        %v2578 = vadd.s32 %v1803, 1
        %v2579 = vadd.s32 %v1804, 1
        %v2580 = vadd.s32 %v1805, 1
        %v2581 = vadd.s32 %v1806, 1
        %v2582 = vadd.s32 %v1807, 1
        %v2583 = vadd.s32 %v1808, 1
        %v2584 = vadd.s32 %v1809, 1
        %v2585 = vadd.s32 %v1810, 1
        %v2586 = vadd.s32 %v1811, 1
        %v2587 = vadd.s32 %v1812, 1
        %v2588 = vadd.s32 %v1813, 1
        %v2589 = vadd.s32 %v1814, 1
        %v2590 = vadd.s32 %v1815, 1
        %v2591 = vadd.s32 %v1816, 1
        %v2592 = vadd.s32 %v1817, 1
        %v2593 = vadd.s32 %v1818, 1
        %v2594 = vadd.s32 %v1819, 1
        %v2595 = vadd.s32 %v1820, 1
        %v2596 = vadd.s32 %v1821, 1
        %v2597 = vadd.s32 %v1822, 1
        %v2598 = vadd.s32 %v1823, 1
        %v2599 = vadd.s32 %v1824, 1
        %v2600 = vand.u32 %v2575, 2
        %v2601 = vand.u32 %v2576, 2
        %v2602 = vand.u32 %v2577, 2
        %v2603 = vand.u32 %v2578, 2
        %v2604 = vand.u32 %v2579, 2
        %v2605 = vand.u32 %v2580, 2
        %v2606 = vand.u32 %v2581, 2
        %v2607 = vand.u32 %v2582, 2
        %v2608 = vand.u32 %v2583, 2
        %v2609 = vand.u32 %v2584, 2
        %v2610 = vand.u32 %v2585, 2
        %v2611 = vand.u32 %v2586, 2
        %v2612 = vand.u32 %v2587, 2
        %v2613 = vand.u32 %v2588, 2
        %v2614 = vand.u32 %v2589, 2
        %v2615 = vand.u32 %v2590, 2
        %v2616 = vand.u32 %v2591, 2
        %v2617 = vand.u32 %v2592, 2
        %v2618 = vand.u32 %v2593, 2
        %v2619 = vand.u32 %v2594, 2
        %v2620 = vand.u32 %v2595, 2
        %v2621 = vand.u32 %v2596, 2
        %v2622 = vand.u32 %v2597, 2
        %v2623 = vand.u32 %v2598, 2
        %v2624 = vand.u32 %v2599, 2
        %vm2625 = vcmp.ne.s32.totalorder %v2600, 0
        %vm2626 = vcmp.ne.s32.totalorder %v2601, 0
        %vm2627 = vcmp.ne.s32.totalorder %v2602, 0
        %vm2628 = vcmp.ne.s32.totalorder %v2603, 0
        %vm2629 = vcmp.ne.s32.totalorder %v2604, 0
        %vm2630 = vcmp.ne.s32.totalorder %v2605, 0
        %vm2631 = vcmp.ne.s32.totalorder %v2606, 0
        %vm2632 = vcmp.ne.s32.totalorder %v2607, 0
        %vm2633 = vcmp.ne.s32.totalorder %v2608, 0
        %vm2634 = vcmp.ne.s32.totalorder %v2609, 0
        %vm2635 = vcmp.ne.s32.totalorder %v2610, 0
        %vm2636 = vcmp.ne.s32.totalorder %v2611, 0
        %vm2637 = vcmp.ne.s32.totalorder %v2612, 0
        %vm2638 = vcmp.ne.s32.totalorder %v2613, 0
        %vm2639 = vcmp.ne.s32.totalorder %v2614, 0
        %vm2640 = vcmp.ne.s32.totalorder %v2615, 0
        %vm2641 = vcmp.ne.s32.totalorder %v2616, 0
        %vm2642 = vcmp.ne.s32.totalorder %v2617, 0
        %vm2643 = vcmp.ne.s32.totalorder %v2618, 0
        %vm2644 = vcmp.ne.s32.totalorder %v2619, 0
        %vm2645 = vcmp.ne.s32.totalorder %v2620, 0
        %vm2646 = vcmp.ne.s32.totalorder %v2621, 0
        %vm2647 = vcmp.ne.s32.totalorder %v2622, 0
        %vm2648 = vcmp.ne.s32.totalorder %v2623, 0
        %vm2649 = vcmp.ne.s32.totalorder %v2624, 0
        %v2650 = vsub.f32 0.0, %v2450
        %v2651 = vsub.f32 0.0, %v2451
        %v2652 = vsub.f32 0.0, %v2452
        %v2653 = vsub.f32 0.0, %v2453
        %v2654 = vsub.f32 0.0, %v2454
        %v2655 = vsub.f32 0.0, %v2455
        %v2656 = vsub.f32 0.0, %v2456
        %v2657 = vsub.f32 0.0, %v2457
        %v2658 = vsub.f32 0.0, %v2458
        %v2659 = vsub.f32 0.0, %v2459
        %v2660 = vsub.f32 0.0, %v2460
        %v2661 = vsub.f32 0.0, %v2461
        %v2662 = vsub.f32 0.0, %v2462
        %v2663 = vsub.f32 0.0, %v2463
        %v2664 = vsub.f32 0.0, %v2464
        %v2665 = vsub.f32 0.0, %v2465
        %v2666 = vsub.f32 0.0, %v2466
        %v2667 = vsub.f32 0.0, %v2467
        %v2668 = vsub.f32 0.0, %v2468
        %v2669 = vsub.f32 0.0, %v2469
        %v2670 = vsub.f32 0.0, %v2470
        %v2671 = vsub.f32 0.0, %v2471
        %v2672 = vsub.f32 0.0, %v2472
        %v2673 = vsub.f32 0.0, %v2473
        %v2674 = vsub.f32 0.0, %v2474
        %v2675 = vsel %vm2625, %v2650, %v2450
        %v2676 = vsel %vm2626, %v2651, %v2451
        %v2677 = vsel %vm2627, %v2652, %v2452
        %v2678 = vsel %vm2628, %v2653, %v2453
        %v2679 = vsel %vm2629, %v2654, %v2454
        %v2680 = vsel %vm2630, %v2655, %v2455
        %v2681 = vsel %vm2631, %v2656, %v2456
        %v2682 = vsel %vm2632, %v2657, %v2457
        %v2683 = vsel %vm2633, %v2658, %v2458
        %v2684 = vsel %vm2634, %v2659, %v2459
        %v2685 = vsel %vm2635, %v2660, %v2460
        %v2686 = vsel %vm2636, %v2661, %v2461
        %v2687 = vsel %vm2637, %v2662, %v2462
        %v2688 = vsel %vm2638, %v2663, %v2463
        %v2689 = vsel %vm2639, %v2664, %v2464
        %v2690 = vsel %vm2640, %v2665, %v2465
        %v2691 = vsel %vm2641, %v2666, %v2466
        %v2692 = vsel %vm2642, %v2667, %v2467
        %v2693 = vsel %vm2643, %v2668, %v2468
        %v2694 = vsel %vm2644, %v2669, %v2469
        %v2695 = vsel %vm2645, %v2670, %v2470
        %v2696 = vsel %vm2646, %v2671, %v2471
        %v2697 = vsel %vm2647, %v2672, %v2472
        %v2698 = vsel %vm2648, %v2673, %v2473
        %v2699 = vsel %vm2649, %v2674, %v2474
        %2700 = vst [vmem:[%s137] sm:$0xff] %v2675
        %2701 = vst [vmem:[%s137 + $0x10] sm:$0xff] %v2676
        %2702 = vst [vmem:[%s137 + $0x20] sm:$0xff] %v2677
        %2703 = vst [vmem:[%s137 + $0x30] sm:$0xff] %v2678
        %2704 = vst [vmem:[%s137 + $0x40] sm:$0xff] %v2679
        %2705 = vst [vmem:[%s137 + $0x50] sm:$0xff] %v2680
        %2706 = vst [vmem:[%s137 + $0x60] sm:$0xff] %v2681
        %2707 = vst [vmem:[%s137 + $0x70] sm:$0xff] %v2682
        %2708 = vst [vmem:[%s137 + $0x80] sm:$0xff] %v2683
        %2709 = vst [vmem:[%s137 + $0x90] sm:$0xff] %v2684
        %2710 = vst [vmem:[%s137 + $0xa0] sm:$0xff] %v2685
        %2711 = vst [vmem:[%s137 + $0xb0] sm:$0xff] %v2686
        %2712 = vst [vmem:[%s137 + $0xc0] sm:$0xff] %v2687
        %2713 = vst [vmem:[%s137 + $0xd0] sm:$0xff] %v2688
        %2714 = vst [vmem:[%s137 + $0xe0] sm:$0xff] %v2689
        %2715 = vst [vmem:[%s137 + $0xf0] sm:$0xff] %v2690
        %2716 = vst [vmem:[%s137 + $0x100] sm:$0xff] %v2691
        %2717 = vst [vmem:[%s137 + $0x110] sm:$0xff] %v2692
        %2718 = vst [vmem:[%s137 + $0x120] sm:$0xff] %v2693
        %2719 = vst [vmem:[%s137 + $0x130] sm:$0xff] %v2694
        %2720 = vst [vmem:[%s137 + $0x140] sm:$0xff] %v2695
        %2721 = vst [vmem:[%s137 + $0x150] sm:$0xff] %v2696
        %2722 = vst [vmem:[%s137 + $0x160] sm:$0xff] %v2697
        %2723 = vst [vmem:[%s137 + $0x170] sm:$0xff] %v2698
        %2724 = vst [vmem:[%s137 + $0x180] sm:$0xff] %v2699
        %2725 = vst [vmem:[%s137 + $0x8] sm:$0xff] %v2550
        %2726 = vst [vmem:[%s137 + $0x18] sm:$0xff] %v2551
        %2727 = vst [vmem:[%s137 + $0x28] sm:$0xff] %v2552
        %2728 = vst [vmem:[%s137 + $0x38] sm:$0xff] %v2553
        %2729 = vst [vmem:[%s137 + $0x48] sm:$0xff] %v2554
        %2730 = vst [vmem:[%s137 + $0x58] sm:$0xff] %v2555
        %2731 = vst [vmem:[%s137 + $0x68] sm:$0xff] %v2556
        %2732 = vst [vmem:[%s137 + $0x78] sm:$0xff] %v2557
        %2733 = vst [vmem:[%s137 + $0x88] sm:$0xff] %v2558
        %2734 = vst [vmem:[%s137 + $0x98] sm:$0xff] %v2559
        %2735 = vst [vmem:[%s137 + $0xa8] sm:$0xff] %v2560
        %2736 = vst [vmem:[%s137 + $0xb8] sm:$0xff] %v2561
        %2737 = vst [vmem:[%s137 + $0xc8] sm:$0xff] %v2562
        %2738 = vst [vmem:[%s137 + $0xd8] sm:$0xff] %v2563
        %2739 = vst [vmem:[%s137 + $0xe8] sm:$0xff] %v2564
        %2740 = vst [vmem:[%s137 + $0xf8] sm:$0xff] %v2565
        %2741 = vst [vmem:[%s137 + $0x108] sm:$0xff] %v2566
        %2742 = vst [vmem:[%s137 + $0x118] sm:$0xff] %v2567
        %2743 = vst [vmem:[%s137 + $0x128] sm:$0xff] %v2568
        %2744 = vst [vmem:[%s137 + $0x138] sm:$0xff] %v2569
        %2745 = vst [vmem:[%s137 + $0x148] sm:$0xff] %v2570
        %2746 = vst [vmem:[%s137 + $0x158] sm:$0xff] %v2571
        %2747 = vst [vmem:[%s137 + $0x168] sm:$0xff] %v2572
        %2748 = vst [vmem:[%s137 + $0x178] sm:$0xff] %v2573
        %2749 = vst [vmem:[%s137 + $0x188] sm:$0xff] %v2574
        %s2750 = sand.u32 %s71, 1
        %s2751 = scalar_lea.sflag [#allocation3], %s2750
        %s2752 = sand.u32 %s71, 1
        %s2753 = smul.addr %s2752, 400
        %s2754 = scalar_lea.vmem [#allocation2], %s2753
        // Predicated region
        $region29: #{fourier_features.1} parent=27 // pred_check
          %p2755 = pneg %p81
        $region30: #{fourier_features.1} parent=27 // pred_check_branch
          %2757 = sbr.rel (%p2755) target = $region32
        $region31: #{fourier_features.1} parent=27 // pred_region
          %s2758 = smul.u32 25, %s16
          %s2760 = ssub.s32 6400, 6400
          %2761 = vsyncadd %s2751, %s2760
          %s2762 = smul.addr %s2758, 2
          %s2763 = smul.addr %s2762, 128
          %s2764 = scalar_lea.hbm %s2, %s2763
          %s2765 = sshll.u32 %s2754, 4
          %s2766 = int_to_ptr.vmem [resolvable:$true] %s2765
          %2771 = dma.vmem_to_hbm [thread:$0]  %s2766, 6400, %s2764, %s2751, 256, 256, 16
        $region32: #{fourier_features.1} parent=27 // pred_fallthru
          _
      $region28: #{fourier_features.1} parent=5 // pred_fallthru
        _
      %p2772 = scmp.le.s32.totalorder 2, %s11
      // Predicated region
      $region33: #{fourier_features.1} parent=5 // pred_check
        %p2773 = pneg %p2772
      $region34: #{fourier_features.1} parent=5 // pred_check_branch
        %2775 = sbr.rel (%p2773) target = $region36
      $region35: #{fourier_features.1} parent=5 // pred_region
        %s2776 = ssub.s32 %s11, 2
        // Predicated region
        $region37: #{fourier_features.1} parent=35 // pred_check
          %p2777 = pneg %p87
        $region38: #{fourier_features.1} parent=35 // pred_check_branch
          %2779 = sbr.rel (%p2777) target = $region40
        $region39: #{fourier_features.1} parent=35 // pred_region
          %s2780 = sand.u32 %s72, 1
          %s2781 = scalar_lea.sflag [#allocation3], %s2780
          %s2782 = sand.u32 %s72, 1
          %s2783 = smul.addr %s2782, 400
          %s2784 = scalar_lea.vmem [#allocation2], %s2783
          %2785 = dma.done %s2781, 6400
        $region40: #{fourier_features.1} parent=35 // pred_fallthru
          _
      $region36: #{fourier_features.1} parent=5 // pred_fallthru
        _
    $region6: #{fourier_features.1} parent=1 // loop_footer
      %s15 = sadd.s32 1, %s11
    $region7: #{fourier_features.1} parent=1 // loop_footer_branch
      %10 = sbr.rel target = $region3
    $region8: #{fourier_features.1} parent=1 // loop_exit
      _
    %2786 = vsyncpa [#allocation3], 1
    %s2787 = scalar_lea.sflag [#allocation3], 1
    %2788 = vsyncpa %s2787, 1

</llo_original>
